<compile_context>
chip_gen: v5e
topology: v5e:2x2
jax: 0.10.0
libtpu: 0.0.40
codegen_flags: <defaults>
</compile_context>

<pallas_src>
import math

import jax
import jax.numpy as jnp
from jax.experimental import pallas as pl
from jax.experimental.pallas import tpu as pltpu


def _round_up(x: int, m: int) -> int:
    return (x + m - 1) // m * m


def _make_basis(n_fft: int):
    """Interleaved inverse-rDFT basis for bins k=1..n_fft//2 (onesided weights and the
    periodic Hann window folded in).  Rows: [cos_1, sin_1, cos_2, sin_2, ...], shape
    (n_fft, n_fft).  The DC (k=0) contribution is handled as a rank-1 term."""
    m = jnp.arange(n_fft, dtype=jnp.float32)
    win = 0.5 * (1.0 - jnp.cos(2.0 * math.pi * m / n_fft))   # torch.hann_window (periodic)
    k = jnp.arange(1, n_fft // 2 + 1, dtype=jnp.float32)[:, None]     # 1 .. n_fft/2
    ang = 2.0 * math.pi * k * m[None, :] / n_fft
    wk = jnp.where(k == n_fft // 2, 1.0, 2.0)                # onesided weights (k>=1)
    cos_rows = wk * jnp.cos(ang) / n_fft                     # (n_fft//2, n_fft)
    sin_rows = -wk * jnp.sin(ang) / n_fft                    # k=n_fft/2 row is exactly 0
    basis = jnp.stack([cos_rows, sin_rows], axis=1).reshape(n_fft, n_fft)
    basis = basis * win[None, :]
    return basis, win


def _choose_k_tile(n_fft: int, itemsize: int,
                   max_block_bytes: int = 8 << 20, target_steps: int = 4) -> int:
    """Pick the K-block size: >= 4 reduction steps (so basis/spec DMAs pipeline) and
    a basis block of at most ~8 MiB, while keeping tk a multiple of 128."""
    k_total = n_fft
    tk = k_total

    def can_halve(t):
        return t % 256 == 0 and k_total % (t // 2) == 0

    while can_halve(tk) and (k_total // tk < target_steps
                             or tk * n_fft * itemsize > max_block_bytes):
        tk //= 2
    return tk


def _choose_bc_tiles(bc: int, f: int) -> int:
    """Split the batch*channel axis only when each tile keeps M = bc_tile*f >= 256
    (MXU-friendly) and sublane-aligned; prefer the largest number of tiles (more
    pipeline steps + megacore sharding on v7x).  Otherwise keep one tile (max M)."""
    for nt in range(bc, 1, -1):
        if bc % nt:
            continue
        m = (bc // nt) * f
        if m >= 256 and m % 16 == 0:
            return nt
    return 1


def _make_istft_call(n_fft: int, hop: int, f: int, bc_tile: int, num_bc_tiles: int,
                     tk: int, l_pad: int, compute_dtype):
    r = n_fft // hop
    m_tile = bc_tile * f
    num_k = n_fft // tk
    itemsize = jnp.dtype(compute_dtype).itemsize

    def kernel(spec_ref, basis_ref, dc_ref, dcrow_ref, inv_env_ref, out_ref, acc_ref):
        # spec_ref:    (m_tile, tk)        interleaved [re_1, im_1, ...] columns (K-chunk)
        # basis_ref:   (tk, n_fft)         windowed inverse-rDFT basis (K-chunk)
        # dc_ref:      (m_tile, 1)         DC real part per (bc, frame) row
        # dcrow_ref:   (1, n_fft)          win / n_fft  (DC basis row)
        # inv_env_ref: (1, l_pad)          reciprocal hann^2 envelope (flat time)
        # out_ref:     (1, bc_tile, l_pad) flat-time overlap-added audio (VMEM-resident)
        # acc_ref:     (m_tile, n_fft)     f32 frame accumulator across the K axis
        k = pl.program_id(1)

        @pl.when(k == 0)
        def _init():
            # seed with the rank-1 DC contribution: re_0 * win / n_fft
            acc_ref[...] = dc_ref[...] * dcrow_ref[...]

        acc_ref[...] += jnp.dot(spec_ref[...], basis_ref[...],
                                preferred_element_type=jnp.float32)

        @pl.when(k == pl.num_programs(1) - 1)
        def _finalize():
            frames = acc_ref[...].reshape(bc_tile, f, n_fft)

            # Overlap-add directly into the resident output block at lane-aligned
            # static offsets.  Residue class 0 (t ≡ 0 mod r) has disjoint frames that
            # tile [0, n0*n_fft) contiguously -> plain stores; remaining classes
            # accumulate with VMEM read-modify-write.  No F-operand concatenates.
            # TODO(synk): for very large frame counts convert to a fori_loop with
            #   pl.ds dynamic (multiple-of-hop) offsets to keep code size O(1).
            for t in range(0, f, r):
                out_ref[0, :, t * hop:t * hop + n_fft] = frames[:, t, :]
            n0 = len(range(0, f, r))
            tail = n0 * n_fft
            if l_pad > tail:
                out_ref[0, :, tail:] = jnp.zeros((bc_tile, l_pad - tail), jnp.float32)
            for a in range(1, r):
                for t in range(a, f, r):
                    out_ref[0, :, t * hop:t * hop + n_fft] += frames[:, t, :]

            # fused window-envelope normalization; single lane-dense (x128) pass
            out_ref[0] = out_ref[0] * inv_env_ref[...]

    # advisory cost for XLA's scheduler (lets the glue transpose/cast overlap)
    flops = 2 * (num_bc_tiles * m_tile) * n_fft * n_fft
    bytes_accessed = (num_bc_tiles * m_tile * n_fft * itemsize        # spec
                      + num_bc_tiles * n_fft * n_fft * itemsize       # basis (per bc tile)
                      + num_bc_tiles * bc_tile * l_pad * 4            # output
                      + num_bc_tiles * m_tile * 4                     # dc
                      + l_pad * 4 + n_fft * 4)                        # inv_env + dc row
    cost = pl.CostEstimate(flops=flops, transcendentals=0,
                           bytes_accessed=int(bytes_accessed))

    # explicit scoped-VMEM budget (v5e default is only 16 MiB) with headroom
    vmem_est = (2 * m_tile * tk * itemsize        # spec block, double-buffered
                + 2 * tk * n_fft * itemsize       # basis block, double-buffered
                + 2 * m_tile * 4                  # dc
                + 2 * n_fft * 4 + 2 * l_pad * 4   # dc row + inv_env
                + 2 * bc_tile * l_pad * 4         # output block
                + m_tile * n_fft * 4              # accumulator scratch
                + m_tile * n_fft * 4)             # frames value in the finalize step
    vmem_limit = int(min(max(vmem_est * 3 // 2 + (4 << 20), 32 << 20), 100 << 20))

    return pl.pallas_call(
        kernel,
        out_shape=jax.ShapeDtypeStruct((num_bc_tiles, bc_tile, l_pad), jnp.float32),
        grid_spec=pltpu.PrefetchScalarGridSpec(
            num_scalar_prefetch=0,
            grid=(num_bc_tiles, num_k),
            in_specs=[
                pl.BlockSpec((m_tile, tk), lambda i, k: (i, k)),       # spec
                pl.BlockSpec((tk, n_fft), lambda i, k: (k, 0)),        # basis (streamed)
                pl.BlockSpec((m_tile, 1), lambda i, k: (i, 0)),        # dc column
                pl.BlockSpec((1, n_fft), lambda i, k: (0, 0)),         # dc basis row
                pl.BlockSpec((1, l_pad), lambda i, k: (0, 0)),         # inv envelope
            ],
            out_specs=pl.BlockSpec((1, bc_tile, l_pad), lambda i, k: (i, 0, 0)),
            scratch_shapes=[pltpu.VMEM((m_tile, n_fft), jnp.float32)],
        ),
        compiler_params=pltpu.CompilerParams(
            dimension_semantics=("parallel", "arbitrary"),
            vmem_limit_bytes=vmem_limit,
        ),
        cost_estimate=cost,
    )


def istft_forward(estimates, mixaudiolen: int, n_fft: int = 512, n_hop: int = 128,
                  compute_dtype=jnp.bfloat16):
    """
    estimates: (nb_frames, nb_samples, nb_channels, n_fft//2+1, 2) float32
    returns:   (nb_samples, nb_channels, mixaudiolen) float32

    compute_dtype controls the matmul operand dtype only (bf16 default for MXU rate /
    DMA bytes); accumulation, OLA and normalization stay float32.
    """
    f, b, c, bins, two = estimates.shape
    assert two == 2 and bins == n_fft // 2 + 1
    assert n_fft % n_hop == 0 and n_fft % 128 == 0
    bc = b * c
    r = n_fft // n_hop
    l_blocks = f + r - 1
    l_total = l_blocks * n_hop
    l_pad = _round_up(l_total, 128)          # lane-dense output (unmasked stores)

    # ---- glue: frame-axis transpose only (contiguous 2*bins rows), interleaved
    # (re, im) minor order kept, contiguous [:, 2:] slice drops the DC pair so the
    # matmul K is exactly n_fft.  DC real part travels as a tiny (bc*f, 1) column.
    est_bcf = jnp.transpose(estimates, (1, 2, 0, 3, 4))          # (B, C, F, bins, 2)
    spec_il = est_bcf.reshape(bc * f, 2 * bins)                  # [re0, im0, re1, im1, ...]
    spec = spec_il[:, 2:].astype(compute_dtype)                  # (bc*f, n_fft)
    dc = est_bcf[..., 0, 0].reshape(bc * f, 1).astype(jnp.float32)

    basis, win = _make_basis(n_fft)
    basis = basis.astype(compute_dtype)                          # (n_fft, n_fft)
    dcrow = (win / n_fft).reshape(1, n_fft).astype(jnp.float32)

    # hann^2 overlap envelope, vectorized:
    #   env_block[m, :] = sum_j 1[0 <= m-j < F] * win^2[j*hop:(j+1)*hop]
    wsq_seg = (win * win).reshape(r, n_hop)
    m_idx = jnp.arange(l_blocks)[:, None]
    j_idx = jnp.arange(r)[None, :]
    valid = ((m_idx - j_idx >= 0) & (m_idx - j_idx < f)).astype(jnp.float32)
    env = (valid @ wsq_seg).reshape(l_total)
    inv_env = jnp.where(env > 1e-11, 1.0 / jnp.maximum(env, 1e-11), 0.0)
    if l_pad > l_total:
        inv_env = jnp.concatenate([inv_env, jnp.zeros((l_pad - l_total,), jnp.float32)])
    inv_env = inv_env.reshape(1, l_pad)

    num_bc_tiles = _choose_bc_tiles(bc, f)
    bc_tile = bc // num_bc_tiles
    tk = _choose_k_tile(n_fft, jnp.dtype(compute_dtype).itemsize)

    call = _make_istft_call(n_fft, n_hop, f, bc_tile, num_bc_tiles, tk, l_pad,
                            compute_dtype)
    y = call(spec, basis, dc, dcrow, inv_env).reshape(bc, l_pad)

    # center=True trim + crop/pad to mixaudiolen
    start = n_fft // 2
    y = y[:, start:start + mixaudiolen]
    if y.shape[1] < mixaudiolen:
        y = jnp.pad(y, ((0, 0), (0, mixaudiolen - y.shape[1])))
    return y.reshape(b, c, mixaudiolen)


def istft_reference(estimates, mixaudiolen: int, n_fft: int = 512, n_hop: int = 128):
    """Pure-JAX reference (same math, independent construction) for sanity checking."""
    f, b, c, bins, _ = estimates.shape
    bc = b * c
    r = n_fft // n_hop
    l_total = (f + r - 1) * n_hop
    est = jnp.transpose(estimates, (1, 2, 3, 0, 4)).reshape(bc, bins, f, 2)
    re = jnp.transpose(est[..., 0], (0, 2, 1))                  # (BC, F, bins)
    im = jnp.transpose(est[..., 1], (0, 2, 1))
    k = jnp.arange(bins, dtype=jnp.float32)[:, None]
    n = jnp.arange(n_fft, dtype=jnp.float32)[None, :]
    ang = 2.0 * math.pi * k * n / n_fft
    wk = jnp.where((k == 0) | (k == n_fft // 2), 1.0, 2.0)
    cos_b = wk * jnp.cos(ang) / n_fft
    sin_b = -wk * jnp.sin(ang) / n_fft
    m = jnp.arange(n_fft, dtype=jnp.float32)
    win = 0.5 * (1.0 - jnp.cos(2.0 * math.pi * m / n_fft))
    hp = jax.lax.Precision.HIGHEST
    frames = (jnp.einsum('bfk,kn->bfn', re, cos_b, precision=hp)
              + jnp.einsum('bfk,kn->bfn', im, sin_b, precision=hp)) * win[None, None, :]
    y = jnp.zeros((bc, l_total), jnp.float32)
    env = jnp.zeros((l_total,), jnp.float32)
    for t in range(f):
        y = y.at[:, t * n_hop:t * n_hop + n_fft].add(frames[:, t, :])
        env = env.at[t * n_hop:t * n_hop + n_fft].add(win * win)
    y = y * jnp.where(env > 1e-11, 1.0 / jnp.maximum(env, 1e-11), 0.0)[None, :]
    start = n_fft // 2
    y = y[:, start:start + mixaudiolen]
    if y.shape[1] < mixaudiolen:
        y = jnp.pad(y, ((0, 0), (0, mixaudiolen - y.shape[1])))
    return y.reshape(b, c, mixaudiolen)


if __name__ == "__main__":
    # Small shapes consistent with the module (real defaults n_fft=4096, hop=1024;
    # keep the same r=4 ratio with a lane-friendly hop).
    n_fft, n_hop = 512, 128
    nb_frames, batch, channels = 8, 2, 2
    bins = n_fft // 2 + 1
    mixaudiolen = (nb_frames - 1) * n_hop          # 896

    key = jax.random.PRNGKey(0)
    estimates = jax.random.normal(
        key, (nb_frames, batch, channels, bins, 2), dtype=jnp.float32)

    y_ref = istft_reference(estimates, mixaudiolen, n_fft=n_fft, n_hop=n_hop)

    # f32 operand path: tight check against the independent reference
    y32 = istft_forward(estimates, mixaudiolen, n_fft=n_fft, n_hop=n_hop,
                        compute_dtype=jnp.float32)
    y32 = jax.block_until_ready(y32)
    assert y32.shape == (batch, channels, mixaudiolen)
    err32 = float(jnp.max(jnp.abs(y32 - y_ref)))
    assert jnp.allclose(y32, y_ref, atol=2e-3, rtol=2e-3), err32

    # default bf16 MXU path (f32 accumulation): looser tolerance for input rounding
    y16 = istft_forward(estimates, mixaudiolen, n_fft=n_fft, n_hop=n_hop)
    y16 = jax.block_until_ready(y16)
    assert y16.shape == (batch, channels, mixaudiolen)
    err16 = float(jnp.max(jnp.abs(y16 - y_ref)))
    assert jnp.allclose(y16, y_ref, atol=2e-2, rtol=2e-2), err16

    print("KERNEL_OK")
</pallas_src>

<mosaic_0001>
module attributes {stable_mosaic.version = 11 : i64} {
  func.func @kernel(%arg0: i32, %arg1: i32, %arg2: memref<32x128xf32, #tpu.memory_space<vmem>>, %arg3: memref<128x512xf32, #tpu.memory_space<vmem>>, %arg4: memref<32x1xf32, #tpu.memory_space<vmem>>, %arg5: memref<1x512xf32, #tpu.memory_space<vmem>>, %arg6: memref<1x1408xf32, #tpu.memory_space<vmem>>, %arg7: memref<1x4x1408xf32, #tpu.memory_space<vmem>>, %arg8: memref<32x512xf32, #tpu.memory_space<vmem>>) attributes {dimension_semantics = [#tpu.dimension_semantics<parallel>, #tpu.dimension_semantics<arbitrary>], iteration_bounds = array<i64: 1, 4>, scalar_prefetch = 0 : i64, scratch_operands = 1 : i64, tpu.core_type = #tpu.core_type<tc>, window_params = [{transform_indices = @transform_0, window_bounds = array<i64: 32, 128>}, {transform_indices = @transform_1, window_bounds = array<i64: 128, 512>}, {transform_indices = @transform_2, window_bounds = array<i64: 32, 1>}, {pipeline_mode = #tpu.pipeline_mode<synchronous>, transform_indices = @transform_3, window_bounds = array<i64: 1, 512>}, {pipeline_mode = #tpu.pipeline_mode<synchronous>, transform_indices = @transform_4, window_bounds = array<i64: 1, 1408>}, {transform_indices = @transform_5, window_bounds = array<i64: 1, 4, 1408>}]} {
    %c0_i32 = arith.constant 0 : i32
    %0 = arith.cmpi eq, %arg1, %c0_i32 : i32
    %1 = arith.extui %0 : i1 to i32
    %c0_i32_0 = arith.constant 0 : i32
    %2 = arith.cmpi ne, %1, %c0_i32_0 : i32
    scf.if %2 {
      %c0_9 = arith.constant 0 : index
      %c0_10 = arith.constant 0 : index
      %12 = vector.load %arg4[%c0_9, %c0_10] : memref<32x1xf32, #tpu.memory_space<vmem>>, vector<32x1xf32>
      %c0_11 = arith.constant 0 : index
      %c0_12 = arith.constant 0 : index
      %13 = vector.load %arg5[%c0_11, %c0_12] : memref<1x512xf32, #tpu.memory_space<vmem>>, vector<1x512xf32>
      %14 = vector.broadcast %12 : vector<32x1xf32> to vector<32x512xf32>
      %15 = vector.broadcast %13 : vector<1x512xf32> to vector<32x512xf32>
      %16 = arith.mulf %14, %15 : vector<32x512xf32>
      %c0_13 = arith.constant 0 : index
      %c0_14 = arith.constant 0 : index
      %17 = vector.load %arg8[%c0_13, %c0_14] : memref<32x512xf32, #tpu.memory_space<vmem>>, vector<32x512xf32>
      tpu.vector_store %arg8[%c0_13, %c0_14], %16 {strides = array<i32>} : memref<32x512xf32, #tpu.memory_space<vmem>>, vector<32x512xf32>,
    } else {
    }
    %c0 = arith.constant 0 : index
    %c0_1 = arith.constant 0 : index
    %3 = vector.load %arg8[%c0, %c0_1] : memref<32x512xf32, #tpu.memory_space<vmem>>, vector<32x512xf32>
    %c0_2 = arith.constant 0 : index
    %c0_3 = arith.constant 0 : index
    %4 = vector.load %arg2[%c0_2, %c0_3] : memref<32x128xf32, #tpu.memory_space<vmem>>, vector<32x128xf32>
    %c0_4 = arith.constant 0 : index
    %c0_5 = arith.constant 0 : index
    %5 = vector.load %arg3[%c0_4, %c0_5] : memref<128x512xf32, #tpu.memory_space<vmem>>, vector<128x512xf32>
    %cst = arith.constant dense<0.000000e+00> : vector<32x512xf32>
    %6 = tpu.matmul %4, %5, %cst {dimension_numbers = #tpu.dot_dimension_numbers<[1], [0], [0], [1], [0, 0, 1, 1], [], []>} : vector<32x128xf32>, vector<128x512xf32>, vector<32x512xf32> -> vector<32x512xf32>
    %7 = arith.addf %3, %6 : vector<32x512xf32>
    %c0_6 = arith.constant 0 : index
    %c0_7 = arith.constant 0 : index
    %8 = vector.load %arg8[%c0_6, %c0_7] : memref<32x512xf32, #tpu.memory_space<vmem>>, vector<32x512xf32>
    tpu.vector_store %arg8[%c0_6, %c0_7], %7 {strides = array<i32>} : memref<32x512xf32, #tpu.memory_space<vmem>>, vector<32x512xf32>,
    %c3_i32 = arith.constant 3 : i32
    %9 = arith.cmpi eq, %arg1, %c3_i32 : i32
    %10 = arith.extui %9 : i1 to i32
    %c0_i32_8 = arith.constant 0 : i32
    %11 = arith.cmpi ne, %10, %c0_i32_8 : i32
    scf.if %11 {
      %c0_9 = arith.constant 0 : index
      %c0_10 = arith.constant 0 : index
      %12 = vector.load %arg8[%c0_9, %c0_10] : memref<32x512xf32, #tpu.memory_space<vmem>>, vector<32x512xf32>
      %13 = vector.shape_cast %12 : vector<32x512xf32> to vector<4x8x512xf32>
      %14 = vector.extract_strided_slice %13 {offsets = [0, 0, 0], sizes = [4, 1, 512], strides = [1, 1, 1]} : vector<4x8x512xf32> to vector<4x1x512xf32>
      %15 = vector.shape_cast %14 : vector<4x1x512xf32> to vector<4x512xf32>
      %c0_11 = arith.constant 0 : index
      %c0_12 = arith.constant 0 : index
      %c0_13 = arith.constant 0 : index
      %16 = vector.load %arg7[%c0_11, %c0_12, %c0_13] : memref<1x4x1408xf32, #tpu.memory_space<vmem>>, vector<1x4x512xf32>
      %17 = vector.shape_cast %16 : vector<1x4x512xf32> to vector<4x512xf32>
      %18 = vector.shape_cast %15 : vector<4x512xf32> to vector<1x4x512xf32>
      tpu.vector_store %arg7[%c0_11, %c0_12, %c0_13], %18 {strides = array<i32>} : memref<1x4x1408xf32, #tpu.memory_space<vmem>>, vector<1x4x512xf32>,
      %19 = vector.extract_strided_slice %13 {offsets = [0, 4, 0], sizes = [4, 1, 512], strides = [1, 1, 1]} : vector<4x8x512xf32> to vector<4x1x512xf32>
      %20 = vector.shape_cast %19 : vector<4x1x512xf32> to vector<4x512xf32>
      %c0_14 = arith.constant 0 : index
      %c0_15 = arith.constant 0 : index
      %c512 = arith.constant 512 : index
      %21 = vector.load %arg7[%c0_14, %c0_15, %c512] : memref<1x4x1408xf32, #tpu.memory_space<vmem>>, vector<1x4x512xf32>
      %22 = vector.shape_cast %21 : vector<1x4x512xf32> to vector<4x512xf32>
      %23 = vector.shape_cast %20 : vector<4x512xf32> to vector<1x4x512xf32>
      tpu.vector_store %arg7[%c0_14, %c0_15, %c512], %23 {strides = array<i32>} : memref<1x4x1408xf32, #tpu.memory_space<vmem>>, vector<1x4x512xf32>,
      %cst_16 = arith.constant 0.000000e+00 : f32
      %24 = vector.broadcast %cst_16 : f32 to vector<4x384xf32>
      %c0_17 = arith.constant 0 : index
      %c0_18 = arith.constant 0 : index
      %c1024 = arith.constant 1024 : index
      %25 = vector.load %arg7[%c0_17, %c0_18, %c1024] : memref<1x4x1408xf32, #tpu.memory_space<vmem>>, vector<1x4x384xf32>
      %26 = vector.shape_cast %25 : vector<1x4x384xf32> to vector<4x384xf32>
      %27 = vector.shape_cast %24 : vector<4x384xf32> to vector<1x4x384xf32>
      tpu.vector_store %arg7[%c0_17, %c0_18, %c1024], %27 {strides = array<i32>} : memref<1x4x1408xf32, #tpu.memory_space<vmem>>, vector<1x4x384xf32>,
      %c0_19 = arith.constant 0 : index
      %c0_20 = arith.constant 0 : index
      %c128 = arith.constant 128 : index
      %28 = vector.load %arg7[%c0_19, %c0_20, %c128] : memref<1x4x1408xf32, #tpu.memory_space<vmem>>, vector<1x4x512xf32>
      %29 = vector.shape_cast %28 : vector<1x4x512xf32> to vector<4x512xf32>
      %30 = vector.extract_strided_slice %13 {offsets = [0, 1, 0], sizes = [4, 1, 512], strides = [1, 1, 1]} : vector<4x8x512xf32> to vector<4x1x512xf32>
      %31 = vector.shape_cast %30 : vector<4x1x512xf32> to vector<4x512xf32>
      %32 = arith.addf %29, %31 : vector<4x512xf32>
      %c0_21 = arith.constant 0 : index
      %c0_22 = arith.constant 0 : index
      %c128_23 = arith.constant 128 : index
      %33 = vector.load %arg7[%c0_21, %c0_22, %c128_23] : memref<1x4x1408xf32, #tpu.memory_space<vmem>>, vector<1x4x512xf32>
      %34 = vector.shape_cast %33 : vector<1x4x512xf32> to vector<4x512xf32>
      %35 = vector.shape_cast %32 : vector<4x512xf32> to vector<1x4x512xf32>
      tpu.vector_store %arg7[%c0_21, %c0_22, %c128_23], %35 {strides = array<i32>} : memref<1x4x1408xf32, #tpu.memory_space<vmem>>, vector<1x4x512xf32>,
      %c0_24 = arith.constant 0 : index
      %c0_25 = arith.constant 0 : index
      %c640 = arith.constant 640 : index
      %36 = vector.load %arg7[%c0_24, %c0_25, %c640] : memref<1x4x1408xf32, #tpu.memory_space<vmem>>, vector<1x4x512xf32>
      %37 = vector.shape_cast %36 : vector<1x4x512xf32> to vector<4x512xf32>
      %38 = vector.extract_strided_slice %13 {offsets = [0, 5, 0], sizes = [4, 1, 512], strides = [1, 1, 1]} : vector<4x8x512xf32> to vector<4x1x512xf32>
      %39 = vector.shape_cast %38 : vector<4x1x512xf32> to vector<4x512xf32>
      %40 = arith.addf %37, %39 : vector<4x512xf32>
      %c0_26 = arith.constant 0 : index
      %c0_27 = arith.constant 0 : index
      %c640_28 = arith.constant 640 : index
      %41 = vector.load %arg7[%c0_26, %c0_27, %c640_28] : memref<1x4x1408xf32, #tpu.memory_space<vmem>>, vector<1x4x512xf32>
      %42 = vector.shape_cast %41 : vector<1x4x512xf32> to vector<4x512xf32>
      %43 = vector.shape_cast %40 : vector<4x512xf32> to vector<1x4x512xf32>
      tpu.vector_store %arg7[%c0_26, %c0_27, %c640_28], %43 {strides = array<i32>} : memref<1x4x1408xf32, #tpu.memory_space<vmem>>, vector<1x4x512xf32>,
      %c0_29 = arith.constant 0 : index
      %c0_30 = arith.constant 0 : index
      %c256 = arith.constant 256 : index
      %44 = vector.load %arg7[%c0_29, %c0_30, %c256] : memref<1x4x1408xf32, #tpu.memory_space<vmem>>, vector<1x4x512xf32>
      %45 = vector.shape_cast %44 : vector<1x4x512xf32> to vector<4x512xf32>
      %46 = vector.extract_strided_slice %13 {offsets = [0, 2, 0], sizes = [4, 1, 512], strides = [1, 1, 1]} : vector<4x8x512xf32> to vector<4x1x512xf32>
      %47 = vector.shape_cast %46 : vector<4x1x512xf32> to vector<4x512xf32>
      %48 = arith.addf %45, %47 : vector<4x512xf32>
      %c0_31 = arith.constant 0 : index
      %c0_32 = arith.constant 0 : index
      %c256_33 = arith.constant 256 : index
      %49 = vector.load %arg7[%c0_31, %c0_32, %c256_33] : memref<1x4x1408xf32, #tpu.memory_space<vmem>>, vector<1x4x512xf32>
      %50 = vector.shape_cast %49 : vector<1x4x512xf32> to vector<4x512xf32>
      %51 = vector.shape_cast %48 : vector<4x512xf32> to vector<1x4x512xf32>
      tpu.vector_store %arg7[%c0_31, %c0_32, %c256_33], %51 {strides = array<i32>} : memref<1x4x1408xf32, #tpu.memory_space<vmem>>, vector<1x4x512xf32>,
      %c0_34 = arith.constant 0 : index
      %c0_35 = arith.constant 0 : index
      %c768 = arith.constant 768 : index
      %52 = vector.load %arg7[%c0_34, %c0_35, %c768] : memref<1x4x1408xf32, #tpu.memory_space<vmem>>, vector<1x4x512xf32>
      %53 = vector.shape_cast %52 : vector<1x4x512xf32> to vector<4x512xf32>
      %54 = vector.extract_strided_slice %13 {offsets = [0, 6, 0], sizes = [4, 1, 512], strides = [1, 1, 1]} : vector<4x8x512xf32> to vector<4x1x512xf32>
      %55 = vector.shape_cast %54 : vector<4x1x512xf32> to vector<4x512xf32>
      %56 = arith.addf %53, %55 : vector<4x512xf32>
      %c0_36 = arith.constant 0 : index
      %c0_37 = arith.constant 0 : index
      %c768_38 = arith.constant 768 : index
      %57 = vector.load %arg7[%c0_36, %c0_37, %c768_38] : memref<1x4x1408xf32, #tpu.memory_space<vmem>>, vector<1x4x512xf32>
      %58 = vector.shape_cast %57 : vector<1x4x512xf32> to vector<4x512xf32>
      %59 = vector.shape_cast %56 : vector<4x512xf32> to vector<1x4x512xf32>
      tpu.vector_store %arg7[%c0_36, %c0_37, %c768_38], %59 {strides = array<i32>} : memref<1x4x1408xf32, #tpu.memory_space<vmem>>, vector<1x4x512xf32>,
      %c0_39 = arith.constant 0 : index
      %c0_40 = arith.constant 0 : index
      %c384 = arith.constant 384 : index
      %60 = vector.load %arg7[%c0_39, %c0_40, %c384] : memref<1x4x1408xf32, #tpu.memory_space<vmem>>, vector<1x4x512xf32>
      %61 = vector.shape_cast %60 : vector<1x4x512xf32> to vector<4x512xf32>
      %62 = vector.extract_strided_slice %13 {offsets = [0, 3, 0], sizes = [4, 1, 512], strides = [1, 1, 1]} : vector<4x8x512xf32> to vector<4x1x512xf32>
      %63 = vector.shape_cast %62 : vector<4x1x512xf32> to vector<4x512xf32>
      %64 = arith.addf %61, %63 : vector<4x512xf32>
      %c0_41 = arith.constant 0 : index
      %c0_42 = arith.constant 0 : index
      %c384_43 = arith.constant 384 : index
      %65 = vector.load %arg7[%c0_41, %c0_42, %c384_43] : memref<1x4x1408xf32, #tpu.memory_space<vmem>>, vector<1x4x512xf32>
      %66 = vector.shape_cast %65 : vector<1x4x512xf32> to vector<4x512xf32>
      %67 = vector.shape_cast %64 : vector<4x512xf32> to vector<1x4x512xf32>
      tpu.vector_store %arg7[%c0_41, %c0_42, %c384_43], %67 {strides = array<i32>} : memref<1x4x1408xf32, #tpu.memory_space<vmem>>, vector<1x4x512xf32>,
      %c0_44 = arith.constant 0 : index
      %c0_45 = arith.constant 0 : index
      %c896 = arith.constant 896 : index
      %68 = vector.load %arg7[%c0_44, %c0_45, %c896] : memref<1x4x1408xf32, #tpu.memory_space<vmem>>, vector<1x4x512xf32>
      %69 = vector.shape_cast %68 : vector<1x4x512xf32> to vector<4x512xf32>
      %70 = vector.extract_strided_slice %13 {offsets = [0, 7, 0], sizes = [4, 1, 512], strides = [1, 1, 1]} : vector<4x8x512xf32> to vector<4x1x512xf32>
      %71 = vector.shape_cast %70 : vector<4x1x512xf32> to vector<4x512xf32>
      %72 = arith.addf %69, %71 : vector<4x512xf32>
      %c0_46 = arith.constant 0 : index
      %c0_47 = arith.constant 0 : index
      %c896_48 = arith.constant 896 : index
      %73 = vector.load %arg7[%c0_46, %c0_47, %c896_48] : memref<1x4x1408xf32, #tpu.memory_space<vmem>>, vector<1x4x512xf32>
      %74 = vector.shape_cast %73 : vector<1x4x512xf32> to vector<4x512xf32>
      %75 = vector.shape_cast %72 : vector<4x512xf32> to vector<1x4x512xf32>
      tpu.vector_store %arg7[%c0_46, %c0_47, %c896_48], %75 {strides = array<i32>} : memref<1x4x1408xf32, #tpu.memory_space<vmem>>, vector<1x4x512xf32>,
      %c0_49 = arith.constant 0 : index
      %c0_50 = arith.constant 0 : index
      %c0_51 = arith.constant 0 : index
      %76 = vector.load %arg7[%c0_49, %c0_50, %c0_51] : memref<1x4x1408xf32, #tpu.memory_space<vmem>>, vector<1x4x1408xf32>
      %77 = vector.shape_cast %76 : vector<1x4x1408xf32> to vector<4x1408xf32>
      %c0_52 = arith.constant 0 : index
      %c0_53 = arith.constant 0 : index
      %78 = vector.load %arg6[%c0_52, %c0_53] : memref<1x1408xf32, #tpu.memory_space<vmem>>, vector<1x1408xf32>
      %79 = vector.broadcast %78 : vector<1x1408xf32> to vector<4x1408xf32>
      %80 = arith.mulf %77, %79 : vector<4x1408xf32>
      %c0_54 = arith.constant 0 : index
      %c0_55 = arith.constant 0 : index
      %c0_56 = arith.constant 0 : index
      %81 = vector.load %arg7[%c0_54, %c0_55, %c0_56] : memref<1x4x1408xf32, #tpu.memory_space<vmem>>, vector<1x4x1408xf32>
      %82 = vector.shape_cast %81 : vector<1x4x1408xf32> to vector<4x1408xf32>
      %83 = vector.shape_cast %80 : vector<4x1408xf32> to vector<1x4x1408xf32>
      tpu.vector_store %arg7[%c0_54, %c0_55, %c0_56], %83 {strides = array<i32>} : memref<1x4x1408xf32, #tpu.memory_space<vmem>>, vector<1x4x1408xf32>,
    } else {
    }
    return
  }
  func.func @transform_0(%arg0: i32, %arg1: i32) -> (i32, i32) {
    %c0_i32 = arith.constant 0 : i32
    return %arg0, %arg1 : i32, i32
  }
  func.func @transform_1(%arg0: i32, %arg1: i32) -> (i32, i32) {
    %c0_i32 = arith.constant 0 : i32
    %c0_i32_0 = arith.constant 0 : i32
    return %arg1, %c0_i32 : i32, i32
  }
  func.func @transform_2(%arg0: i32, %arg1: i32) -> (i32, i32) {
    %c0_i32 = arith.constant 0 : i32
    %c0_i32_0 = arith.constant 0 : i32
    return %arg0, %c0_i32 : i32, i32
  }
  func.func @transform_3(%arg0: i32, %arg1: i32) -> (i32, i32) {
    %c0_i32 = arith.constant 0 : i32
    %c0_i32_0 = arith.constant 0 : i32
    %c0_i32_1 = arith.constant 0 : i32
    return %c0_i32, %c0_i32_0 : i32, i32
  }
  func.func @transform_4(%arg0: i32, %arg1: i32) -> (i32, i32) {
    %c0_i32 = arith.constant 0 : i32
    %c0_i32_0 = arith.constant 0 : i32
    %c0_i32_1 = arith.constant 0 : i32
    return %c0_i32, %c0_i32_0 : i32, i32
  }
  func.func @transform_5(%arg0: i32, %arg1: i32) -> (i32, i32, i32) {
    %c0_i32 = arith.constant 0 : i32
    %c0_i32_0 = arith.constant 0 : i32
    %c0_i32_1 = arith.constant 0 : i32
    return %arg0, %c0_i32, %c0_i32_0 : i32, i32, i32
  }
}

</mosaic_0001>

<llo_original>
// kernel: tpu_custom_call.1
$region0: #{tpu_custom_call.1}
  #allocation0 [shape = 'u32[]', space=smem, size = 0x4, offset = 0x4, fixed_abs, tag = 'smem constant byte address 0x4 - core index']
  #allocation1 [shape = 'u32[72,128]{1,0:T(1,128)}', space=vmem, size = 0x9000, scoped, tag = 'internal scratch']
  #allocation2 [shape = 'f32[32,512]{1,0:T(8,128)}', space=vmem, size = 0x10000, scoped, tag = 'scratch operand']
  %s0 = inlined_call_operand.hbm [shape: f32[32,512], index: 0, kind: input, shape index: {}]
  %s1 = inlined_call_operand.hbm [shape: f32[512,512], index: 1, kind: input, shape index: {}]
  %s2 = inlined_call_operand.vmem [shape: f32[32,1], index: 2, kind: input, shape index: {}]
  %s3 = inlined_call_operand.vmem [shape: f32[1,512], index: 3, kind: input, shape index: {}]
  %s4 = inlined_call_operand.vmem [shape: f32[1,1408], index: 4, kind: input, shape index: {}]
  %s5 = inlined_call_operand.hbm [shape: f32[1,4,1408], index: 5, kind: output, shape index: {}]
  %s6 = sld [smem:[#allocation0]]
  $region69: #{tpu_custom_call.1} parent=0
    _
  %s8 = ssub.s32 1, %s6
  %s9 = scalar_select 0, %s8, %s6
  $region1: #{tpu_custom_call.1} parent=0
    #allocation3 [shape = 'u8[32768]{0}', space=vmem, size = 0x8000, scoped, tag = 'input window, operand 0']
    #allocation4 [shape = 's32[2]{0}', space=sflag, size = 0x8, scoped, tag = 'scoped memory for tpu_custom_call.1']
    #allocation5 [shape = 's32[2]{0}', space=sflag, size = 0x8, scoped, tag = 'scoped memory for tpu_custom_call.1']
    #allocation6 [shape = 'u8[524288]{0}', space=vmem, size = 0x80000, scoped, tag = 'input window, operand 1']
    #allocation7 [shape = 's32[2]{0}', space=sflag, size = 0x8, scoped, tag = 'scoped memory for tpu_custom_call.1']
    #allocation8 [shape = 'u8[22528]{0}', space=vmem, size = 0x5800, scoped, tag = 'output window, operand 0, single buffered']
    %10 = vsyncpa [#allocation4], 0
    %s11 = scalar_lea.sflag [#allocation4], 1
    %12 = vsyncpa %s11, 0
    %13 = vsyncpa [#allocation7], 0
    %s14 = scalar_lea.sflag [#allocation7], 1
    %15 = vsyncpa %s14, 0
    %16 = vsyncpa [#allocation5], 0
    loop: start=0, step=1, limit=6
    $region2: #{tpu_custom_call.1} parent=1 // loop_pre_header
      _
    $region3: #{tpu_custom_call.1} parent=1 // loop_header
      %s18 = sphi 0, %s22
      %p19 = scmp.ge.s32.totalorder %s18, 6
      %s25 = sphi 0, %s37
      %s26 = sphi 0, %s33
      %s27 = sphi 0, %s25
      %s28 = sphi 0, %s26
      %s29 = sphi 0, %s27
      %s30 = sphi 0, %s28
      %s42 = sphi 0, %s44
      %s45 = sphi 0, %s42
      %s46 = sphi 0, %s45
      %s62 = sphi 0, %s46
      %s68 = sphi 0, %s70
      %s71 = sphi 0, %s68
      %s72 = sphi 0, %s71
      %s88 = sphi 0, %s72
      %s94 = sphi 0, %s96
      %s97 = sphi 0, %s94
      %s98 = sphi 0, %s97
      %s114 = sphi 0, %s98
      %s118 = sphi 0, %s118
      %s120 = sphi 0, %s118
      %s121 = sphi 0, %s120
      %s135 = sphi 0, %s121
      %s139 = sphi 0, %s139
      %s141 = sphi 0, %s139
      %s142 = sphi 0, %s141
      %s156 = sphi 0, %s142
      %s162 = sphi 0, %s164
      %s165 = sphi 0, %s162
      %s166 = sphi 0, %s165
      %s182 = sphi 0, %s166
    $region4: #{tpu_custom_call.1} parent=1 // loop_header_branch
      %21 = sbr.rel (%p19) target = $region8
    $region5: #{tpu_custom_call.1} parent=1 // loop_body
      %s23 = ssub.s32 %s18, 1
      %s24 = ssub.s32 %s18, 2
      %s31 = sadd.s32 1, %s26
      %p32 = scmp.ge.s32.totalorder %s31, 4
      %s33 = scalar_select %p32, 0, %s31
      %s34 = sadd.s32 1, %s25
      %s35 = scalar_select %p32, %s34, %s25
      %p36 = scmp.ge.s32.totalorder %s35, 1
      %s37 = scalar_select %p36, 0, %s35
      %s38 = ssub.s32 %s25, %s37
      %s39 = ssub.s32 %s26, %s33
      %s40 = sor.u32 %s38, %s39
      %p41 = scmp.eq.s32.totalorder %s40, 0
      %s43 = sadd.s32 %s42, 1
      %s44 = scalar_select %p41, %s42, %s43
      %p47 = pneg %p41
      %p48 = scmp.eq.s32.totalorder %s18, 3
      %p49 = por %p47, %p48
      %p50 = scmp.ne.s32.totalorder %s42, %s45
      %p51 = scmp.eq.s32.totalorder %s18, 0
      %p52 = por %p50, %p51
      %p53 = scmp.ne.s32.totalorder %s42, %s45
      %p54 = scmp.eq.s32.totalorder %s23, 3
      %p55 = por %p53, %p54
      %p56 = scmp.ne.s32.totalorder %s45, %s46
      %p57 = scmp.eq.s32.totalorder %s23, 0
      %p58 = por %p56, %p57
      %p59 = scmp.ne.s32.totalorder %s45, %s46
      %p60 = scmp.eq.s32.totalorder %s24, 3
      %p61 = por %p59, %p60
      %p63 = scmp.ne.s32.totalorder %s46, %s62
      %p64 = scmp.eq.s32.totalorder %s24, 0
      %p65 = por %p63, %p64
      %s66 = ssub.s32 %s26, %s33
      %p67 = scmp.eq.s32.totalorder %s66, 0
      %s69 = sadd.s32 %s68, 1
      %s70 = scalar_select %p67, %s68, %s69
      %p73 = pneg %p67
      %p74 = scmp.eq.s32.totalorder %s18, 3
      %p75 = por %p73, %p74
      %p76 = scmp.ne.s32.totalorder %s68, %s71
      %p77 = scmp.eq.s32.totalorder %s18, 0
      %p78 = por %p76, %p77
      %p79 = scmp.ne.s32.totalorder %s68, %s71
      %p80 = scmp.eq.s32.totalorder %s23, 3
      %p81 = por %p79, %p80
      %p82 = scmp.ne.s32.totalorder %s71, %s72
      %p83 = scmp.eq.s32.totalorder %s23, 0
      %p84 = por %p82, %p83
      %p85 = scmp.ne.s32.totalorder %s71, %s72
      %p86 = scmp.eq.s32.totalorder %s24, 3
      %p87 = por %p85, %p86
      %p89 = scmp.ne.s32.totalorder %s72, %s88
      %p90 = scmp.eq.s32.totalorder %s24, 0
      %p91 = por %p89, %p90
      %s92 = ssub.s32 %s25, %s37
      %p93 = scmp.eq.s32.totalorder %s92, 0
      %s95 = sadd.s32 %s94, 1
      %s96 = scalar_select %p93, %s94, %s95
      %p99 = pneg %p93
      %p100 = scmp.eq.s32.totalorder %s18, 3
      %p101 = por %p99, %p100
      %p102 = scmp.ne.s32.totalorder %s94, %s97
      %p103 = scmp.eq.s32.totalorder %s18, 0
      %p104 = por %p102, %p103
      %p105 = scmp.ne.s32.totalorder %s94, %s97
      %p106 = scmp.eq.s32.totalorder %s23, 3
      %p107 = por %p105, %p106
      %p108 = scmp.ne.s32.totalorder %s97, %s98
      %p109 = scmp.eq.s32.totalorder %s23, 0
      %p110 = por %p108, %p109
      %p111 = scmp.ne.s32.totalorder %s97, %s98
      %p112 = scmp.eq.s32.totalorder %s24, 3
      %p113 = por %p111, %p112
      %p115 = scmp.ne.s32.totalorder %s98, %s114
      %p116 = scmp.eq.s32.totalorder %s24, 0
      %p117 = por %p115, %p116
      %s119 = sadd.s32 %s118, 1
      %p122 = scmp.eq.s32.totalorder %s18, 3
      %p123 = scmp.ne.s32.totalorder %s118, %s120
      %p124 = scmp.eq.s32.totalorder %s18, 0
      %p125 = por %p123, %p124
      %p126 = scmp.ne.s32.totalorder %s118, %s120
      %p127 = scmp.eq.s32.totalorder %s23, 3
      %p128 = por %p126, %p127
      %p129 = scmp.ne.s32.totalorder %s120, %s121
      %p130 = scmp.eq.s32.totalorder %s23, 0
      %p131 = por %p129, %p130
      %p132 = scmp.ne.s32.totalorder %s120, %s121
      %p133 = scmp.eq.s32.totalorder %s24, 3
      %p134 = por %p132, %p133
      %p136 = scmp.ne.s32.totalorder %s121, %s135
      %p137 = scmp.eq.s32.totalorder %s24, 0
      %p138 = por %p136, %p137
      %s140 = sadd.s32 %s139, 1
      %p143 = scmp.eq.s32.totalorder %s18, 3
      %p144 = scmp.ne.s32.totalorder %s139, %s141
      %p145 = scmp.eq.s32.totalorder %s18, 0
      %p146 = por %p144, %p145
      %p147 = scmp.ne.s32.totalorder %s139, %s141
      %p148 = scmp.eq.s32.totalorder %s23, 3
      %p149 = por %p147, %p148
      %p150 = scmp.ne.s32.totalorder %s141, %s142
      %p151 = scmp.eq.s32.totalorder %s23, 0
      %p152 = por %p150, %p151
      %p153 = scmp.ne.s32.totalorder %s141, %s142
      %p154 = scmp.eq.s32.totalorder %s24, 3
      %p155 = por %p153, %p154
      %p157 = scmp.ne.s32.totalorder %s142, %s156
      %p158 = scmp.eq.s32.totalorder %s24, 0
      %p159 = por %p157, %p158
      %s160 = ssub.s32 %s25, %s37
      %p161 = scmp.eq.s32.totalorder %s160, 0
      %s163 = sadd.s32 %s162, 1
      %s164 = scalar_select %p161, %s162, %s163
      %p167 = pneg %p161
      %p168 = scmp.eq.s32.totalorder %s18, 3
      %p169 = por %p167, %p168
      %p170 = scmp.ne.s32.totalorder %s162, %s165
      %p171 = scmp.eq.s32.totalorder %s18, 0
      %p172 = por %p170, %p171
      %p173 = scmp.ne.s32.totalorder %s162, %s165
      %p174 = scmp.eq.s32.totalorder %s23, 3
      %p175 = por %p173, %p174
      %p176 = scmp.ne.s32.totalorder %s165, %s166
      %p177 = scmp.eq.s32.totalorder %s23, 0
      %p178 = por %p176, %p177
      %p179 = scmp.ne.s32.totalorder %s165, %s166
      %p180 = scmp.eq.s32.totalorder %s24, 3
      %p181 = por %p179, %p180
      %p183 = scmp.ne.s32.totalorder %s166, %s182
      %p184 = scmp.eq.s32.totalorder %s24, 0
      %p185 = por %p183, %p184
      %p186 = scmp.le.s32.totalorder 1, %s18
      %p187 = scmp.lt.s32.totalorder %s18, 5
      %p188 = pnand %p186, %p187
      %p189 = pneg %p188
      // Predicated region
      $region9: #{tpu_custom_call.1} parent=5 // pred_check
        _
      $region10: #{tpu_custom_call.1} parent=5 // pred_check_branch
        %191 = sbr.rel (%p188) target = $region12
      $region11: #{tpu_custom_call.1} parent=5 // pred_region
        %s192 = ssub.s32 %s18, 1
        // Predicated region
        $region13: #{tpu_custom_call.1} parent=11 // pred_check
          %p193 = pneg %p110
        $region14: #{tpu_custom_call.1} parent=11 // pred_check_branch
          %195 = sbr.rel (%p193) target = $region16
        $region15: #{tpu_custom_call.1} parent=11 // pred_region
          %s196 = smul.u32 4, %s27
          %p197 = scmp.lt.s32.totalorder %s196, 3
          %s198 = scalar_select %p197, %s196, 3
          %s199 = smul.addr %s198, 8
          %s200 = scalar_lea.vmem %s2, %s199
          %s201 = smul.u32 4, %s27
        $region16: #{tpu_custom_call.1} parent=11 // pred_fallthru
          _
        // Predicated region
        $region17: #{tpu_custom_call.1} parent=11 // pred_check
          %p202 = pneg %p131
        $region18: #{tpu_custom_call.1} parent=11 // pred_check_branch
          %204 = sbr.rel (%p202) target = $region20
        $region19: #{tpu_custom_call.1} parent=11 // pred_region
          _
        $region20: #{tpu_custom_call.1} parent=11 // pred_fallthru
          _
        // Predicated region
        $region21: #{tpu_custom_call.1} parent=11 // pred_check
          %p205 = pneg %p152
        $region22: #{tpu_custom_call.1} parent=11 // pred_check_branch
          %207 = sbr.rel (%p205) target = $region24
        $region23: #{tpu_custom_call.1} parent=11 // pred_region
          _
        $region24: #{tpu_custom_call.1} parent=11 // pred_fallthru
          _
      $region12: #{tpu_custom_call.1} parent=5 // pred_fallthru
        _
      %p208 = scmp.lt.s32.totalorder %s18, 4
      // Predicated region
      $region25: #{tpu_custom_call.1} parent=5 // pred_check
        %p209 = pneg %p208
      $region26: #{tpu_custom_call.1} parent=5 // pred_check_branch
        %211 = sbr.rel (%p209) target = $region28
      $region27: #{tpu_custom_call.1} parent=5 // pred_region
        // Predicated region
        $region29: #{tpu_custom_call.1} parent=27 // pred_check
          %p212 = pneg %p52
        $region30: #{tpu_custom_call.1} parent=27 // pred_check_branch
          %214 = sbr.rel (%p212) target = $region32
        $region31: #{tpu_custom_call.1} parent=27 // pred_region
          %s215 = sand.u32 %s42, 1
          %s216 = scalar_lea.sflag [#allocation4], %s215
          %s217 = sand.u32 %s42, 1
          %s218 = smul.addr %s217, 32
          %s219 = scalar_lea.vmem [#allocation3], %s218
          %s220 = smul.u32 4, %s25
          %222 = vsyncadd %s216, 0
          %s223 = smul.addr %s220, 4
          %s224 = sadd.s32 %s26, %s223
          %s225 = smul.addr %s224, 8
          %s226 = scalar_lea.hbm %s0, %s225
          %s227 = sshll.u32 %s226, 4
          %s228 = int_to_ptr.hbm [resolvable:$true] %s227
          %s229 = sshll.u32 %s219, 4
          %s230 = int_to_ptr.vmem [resolvable:$true] %s229
          %235 = dma.hbm_to_vmem [thread:$0]  %s228, 512, %s230, %s216, 512, 128, 8
        $region32: #{tpu_custom_call.1} parent=27 // pred_fallthru
          _
        // Predicated region
        $region33: #{tpu_custom_call.1} parent=27 // pred_check
          %p236 = pneg %p78
        $region34: #{tpu_custom_call.1} parent=27 // pred_check_branch
          %238 = sbr.rel (%p236) target = $region36
        $region35: #{tpu_custom_call.1} parent=27 // pred_region
          %s239 = sand.u32 %s68, 1
          %s240 = scalar_lea.sflag [#allocation7], %s239
          %s241 = sand.u32 %s68, 1
          %s242 = smul.addr %s241, 512
          %s243 = scalar_lea.vmem [#allocation6], %s242
          %s244 = smul.u32 16, %s26
          %246 = vsyncadd %s240, 0
          %s247 = smul.addr %s244, 4
          %s248 = smul.addr %s247, 8
          %s249 = scalar_lea.hbm %s1, %s248
          %s250 = sshll.u32 %s249, 4
          %s251 = int_to_ptr.hbm [resolvable:$true] %s250
          %s252 = sshll.u32 %s243, 4
          %s253 = int_to_ptr.vmem [resolvable:$true] %s252
          %258 = dma.hbm_to_vmem [thread:$0]  %s251, 8192, %s253, %s240, 512, 512, 32
        $region36: #{tpu_custom_call.1} parent=27 // pred_fallthru
          _
      $region28: #{tpu_custom_call.1} parent=5 // pred_fallthru
        _
      %p259 = scmp.le.s32.totalorder 1, %s18
      %p260 = scmp.lt.s32.totalorder %s18, 5
      %p261 = pnand %p259, %p260
      %p262 = pneg %p261
      // Predicated region
      $region37: #{tpu_custom_call.1} parent=5 // pred_check
        _
      $region38: #{tpu_custom_call.1} parent=5 // pred_check_branch
        %264 = sbr.rel (%p261) target = $region40
      $region39: #{tpu_custom_call.1} parent=5 // pred_region
        %s265 = ssub.s32 %s18, 1
        %s266 = sand.u32 %s45, 1
        %s267 = scalar_lea.sflag [#allocation4], %s266
        %s268 = sand.u32 %s45, 1
        %s269 = smul.addr %s268, 32
        %s270 = scalar_lea.vmem [#allocation3], %s269
        // Predicated region
        $region41: #{tpu_custom_call.1} parent=39 // pred_check
          %p271 = pneg %p58
        $region42: #{tpu_custom_call.1} parent=39 // pred_check_branch
          %273 = sbr.rel (%p271) target = $region44
        $region43: #{tpu_custom_call.1} parent=39 // pred_region
          %275 = dma.done %s267, 512
        $region44: #{tpu_custom_call.1} parent=39 // pred_fallthru
          _
        %s276 = sand.u32 %s71, 1
        %s277 = scalar_lea.sflag [#allocation7], %s276
        %s278 = sand.u32 %s71, 1
        %s279 = smul.addr %s278, 512
        %s280 = scalar_lea.vmem [#allocation6], %s279
        // Predicated region
        $region45: #{tpu_custom_call.1} parent=39 // pred_check
          %p281 = pneg %p84
        $region46: #{tpu_custom_call.1} parent=39 // pred_check_branch
          %283 = sbr.rel (%p281) target = $region48
        $region47: #{tpu_custom_call.1} parent=39 // pred_region
          %285 = dma.done %s277, 8192
        $region48: #{tpu_custom_call.1} parent=39 // pred_fallthru
          _
        %s286 = sand.u32 %s45, 1
        %s287 = scalar_lea.sflag [#allocation4], %s286
        %s288 = sand.u32 %s45, 1
        %s289 = smul.addr %s288, 32
        %s290 = scalar_lea.vmem [#allocation3], %s289
        %p291 = pneg %p58
        %p292 = pneg %p55
        %s293 = sand.u32 %s71, 1
        %s294 = scalar_lea.sflag [#allocation7], %s293
        %s295 = sand.u32 %s71, 1
        %s296 = smul.addr %s295, 512
        %s297 = scalar_lea.vmem [#allocation6], %s296
        %p298 = pneg %p84
        %p299 = pneg %p81
        %s300 = smul.u32 4, %s27
        %p301 = scmp.lt.s32.totalorder %s300, 3
        %s302 = scalar_select %p301, %s300, 3
        %s303 = smul.addr %s302, 8
        %s304 = scalar_lea.vmem %s2, %s303
        %p305 = pneg %p110
        %p306 = pneg %p107
        %p307 = pneg %p131
        %p308 = pneg %p128
        %p309 = pneg %p152
        %p310 = pneg %p149
        %p311 = pneg %p178
        %p312 = pneg %p175
        %s313 = smul.u32 4, %s27
        %s314 = smul.u32 16, %s28
        %s315 = smul.u32 4, %s27
        %p316 = scmp.lt.s32.totalorder %s315, 3
        %s317 = scalar_select %p316, %s315, 3
        %s318 = smul.addr %s317, 8
        %s319 = scalar_lea.vmem %s2, %s318
        %s320 = smul.u32 4, %s27
        %p321 = scmp.eq.s32.totalorder %s28, 0
        // Predicated region
        $region49: #{tpu_custom_call.1} parent=39 // pred_check
          %p322 = pneg %p321
        $region50: #{tpu_custom_call.1} parent=39 // pred_check_branch
          %324 = sbr.rel (%p322) target = $region52
        $region51: #{tpu_custom_call.1} parent=39 // pred_region
          %v325 = vld [vmem:[%s319] sm:$0xff]
          %v326 = vld [vmem:[%s319 + $0x8] sm:$0xff]
          %v327 = vld [vmem:[%s319 + $0x10] sm:$0xff]
          %v328 = vld [vmem:[%s319 + $0x18] sm:$0xff]
          %v329 = vld [vmem:[%s3] sm:$0xf]
          %331 = vset.pattern.permute.xlu0 0
          %332 = vperm.xlu0 %331, %v325
          %v333 = vpop.permute.xlu0 %332
          %336 = vset.pattern.permute.xlu0 0
          %337 = vperm.xlu0 %336, %v326
          %v338 = vpop.permute.xlu0 %337
          %341 = vset.pattern.permute.xlu0 0
          %342 = vperm.xlu0 %341, %v327
          %v343 = vpop.permute.xlu0 %342
          %346 = vset.pattern.permute.xlu0 0
          %347 = vperm.xlu0 %346, %v328
          %v348 = vpop.permute.xlu0 %347
          %v351 = vperm.slane %v329, 0
          %v352 = vperm.slane %v329, 1
          %v353 = vperm.slane %v329, 2
          %v354 = vperm.slane %v329, 3
          %v359 = vmul.f32 %v333, %v351
          %v360 = vmul.f32 %v333, %v352
          %v361 = vmul.f32 %v333, %v353
          %v362 = vmul.f32 %v333, %v354
          %v363 = vmul.f32 %v338, %v351
          %v364 = vmul.f32 %v338, %v352
          %v365 = vmul.f32 %v338, %v353
          %v366 = vmul.f32 %v338, %v354
          %v367 = vmul.f32 %v343, %v351
          %v368 = vmul.f32 %v343, %v352
          %v369 = vmul.f32 %v343, %v353
          %v370 = vmul.f32 %v343, %v354
          %v371 = vmul.f32 %v348, %v351
          %v372 = vmul.f32 %v348, %v352
          %v373 = vmul.f32 %v348, %v353
          %v374 = vmul.f32 %v348, %v354
          %375 = vst [vmem:[#allocation2] sm:$0xff] %v359
          %376 = vst [vmem:[#allocation2 + $0x8] sm:$0xff] %v360
          %377 = vst [vmem:[#allocation2 + $0x10] sm:$0xff] %v361
          %378 = vst [vmem:[#allocation2 + $0x18] sm:$0xff] %v362
          %379 = vst [vmem:[#allocation2 + $0x20] sm:$0xff] %v363
          %380 = vst [vmem:[#allocation2 + $0x28] sm:$0xff] %v364
          %381 = vst [vmem:[#allocation2 + $0x30] sm:$0xff] %v365
          %382 = vst [vmem:[#allocation2 + $0x38] sm:$0xff] %v366
          %383 = vst [vmem:[#allocation2 + $0x40] sm:$0xff] %v367
          %384 = vst [vmem:[#allocation2 + $0x48] sm:$0xff] %v368
          %385 = vst [vmem:[#allocation2 + $0x50] sm:$0xff] %v369
          %386 = vst [vmem:[#allocation2 + $0x58] sm:$0xff] %v370
          %387 = vst [vmem:[#allocation2 + $0x60] sm:$0xff] %v371
          %388 = vst [vmem:[#allocation2 + $0x68] sm:$0xff] %v372
          %389 = vst [vmem:[#allocation2 + $0x70] sm:$0xff] %v373
          %390 = vst [vmem:[#allocation2 + $0x78] sm:$0xff] %v374
        $region52: #{tpu_custom_call.1} parent=39 // pred_fallthru
          _
        %v391 = vld [vmem:[#allocation2] sm:$0xff]
        %v392 = vld [vmem:[#allocation2 + $0x8] sm:$0xff]
        %v393 = vld [vmem:[#allocation2 + $0x10] sm:$0xff]
        %v394 = vld [vmem:[#allocation2 + $0x18] sm:$0xff]
        %v395 = vld [vmem:[#allocation2 + $0x20] sm:$0xff]
        %v396 = vld [vmem:[#allocation2 + $0x28] sm:$0xff]
        %v397 = vld [vmem:[#allocation2 + $0x30] sm:$0xff]
        %v398 = vld [vmem:[#allocation2 + $0x38] sm:$0xff]
        %v399 = vld [vmem:[#allocation2 + $0x40] sm:$0xff]
        %v400 = vld [vmem:[#allocation2 + $0x48] sm:$0xff]
        %v401 = vld [vmem:[#allocation2 + $0x50] sm:$0xff]
        %v402 = vld [vmem:[#allocation2 + $0x58] sm:$0xff]
        %v403 = vld [vmem:[#allocation2 + $0x60] sm:$0xff]
        %v404 = vld [vmem:[#allocation2 + $0x68] sm:$0xff]
        %v405 = vld [vmem:[#allocation2 + $0x70] sm:$0xff]
        %v406 = vld [vmem:[#allocation2 + $0x78] sm:$0xff]
        %v407 = vld [vmem:[%s270] sm:$0xff]
        %v408 = vld [vmem:[%s270 + $0x8] sm:$0xff]
        %v409 = vld [vmem:[%s270 + $0x10] sm:$0xff]
        %v410 = vld [vmem:[%s270 + $0x18] sm:$0xff]
        %v411 = vld [vmem:[%s280] sm:$0xff]
        %v412 = vld [vmem:[%s280 + $0x8] sm:$0xff]
        %v413 = vld [vmem:[%s280 + $0x10] sm:$0xff]
        %v414 = vld [vmem:[%s280 + $0x18] sm:$0xff]
        %v415 = vld [vmem:[%s280 + $0x20] sm:$0xff]
        %v416 = vld [vmem:[%s280 + $0x28] sm:$0xff]
        %v417 = vld [vmem:[%s280 + $0x30] sm:$0xff]
        %v418 = vld [vmem:[%s280 + $0x38] sm:$0xff]
        %v419 = vld [vmem:[%s280 + $0x40] sm:$0xff]
        %v420 = vld [vmem:[%s280 + $0x48] sm:$0xff]
        %v421 = vld [vmem:[%s280 + $0x50] sm:$0xff]
        %v422 = vld [vmem:[%s280 + $0x58] sm:$0xff]
        %v423 = vld [vmem:[%s280 + $0x60] sm:$0xff]
        %v424 = vld [vmem:[%s280 + $0x68] sm:$0xff]
        %v425 = vld [vmem:[%s280 + $0x70] sm:$0xff]
        %v426 = vld [vmem:[%s280 + $0x78] sm:$0xff]
        %v427 = vld [vmem:[%s280 + $0x80] sm:$0xff]
        %v428 = vld [vmem:[%s280 + $0x88] sm:$0xff]
        %v429 = vld [vmem:[%s280 + $0x90] sm:$0xff]
        %v430 = vld [vmem:[%s280 + $0x98] sm:$0xff]
        %v431 = vld [vmem:[%s280 + $0xa0] sm:$0xff]
        %v432 = vld [vmem:[%s280 + $0xa8] sm:$0xff]
        %v433 = vld [vmem:[%s280 + $0xb0] sm:$0xff]
        %v434 = vld [vmem:[%s280 + $0xb8] sm:$0xff]
        %v435 = vld [vmem:[%s280 + $0xc0] sm:$0xff]
        %v436 = vld [vmem:[%s280 + $0xc8] sm:$0xff]
        %v437 = vld [vmem:[%s280 + $0xd0] sm:$0xff]
        %v438 = vld [vmem:[%s280 + $0xd8] sm:$0xff]
        %v439 = vld [vmem:[%s280 + $0xe0] sm:$0xff]
        %v440 = vld [vmem:[%s280 + $0xe8] sm:$0xff]
        %v441 = vld [vmem:[%s280 + $0xf0] sm:$0xff]
        %v442 = vld [vmem:[%s280 + $0xf8] sm:$0xff]
        %v443 = vld [vmem:[%s280 + $0x100] sm:$0xff]
        %v444 = vld [vmem:[%s280 + $0x108] sm:$0xff]
        %v445 = vld [vmem:[%s280 + $0x110] sm:$0xff]
        %v446 = vld [vmem:[%s280 + $0x118] sm:$0xff]
        %v447 = vld [vmem:[%s280 + $0x120] sm:$0xff]
        %v448 = vld [vmem:[%s280 + $0x128] sm:$0xff]
        %v449 = vld [vmem:[%s280 + $0x130] sm:$0xff]
        %v450 = vld [vmem:[%s280 + $0x138] sm:$0xff]
        %v451 = vld [vmem:[%s280 + $0x140] sm:$0xff]
        %v452 = vld [vmem:[%s280 + $0x148] sm:$0xff]
        %v453 = vld [vmem:[%s280 + $0x150] sm:$0xff]
        %v454 = vld [vmem:[%s280 + $0x158] sm:$0xff]
        %v455 = vld [vmem:[%s280 + $0x160] sm:$0xff]
        %v456 = vld [vmem:[%s280 + $0x168] sm:$0xff]
        %v457 = vld [vmem:[%s280 + $0x170] sm:$0xff]
        %v458 = vld [vmem:[%s280 + $0x178] sm:$0xff]
        %v459 = vld [vmem:[%s280 + $0x180] sm:$0xff]
        %v460 = vld [vmem:[%s280 + $0x188] sm:$0xff]
        %v461 = vld [vmem:[%s280 + $0x190] sm:$0xff]
        %v462 = vld [vmem:[%s280 + $0x198] sm:$0xff]
        %v463 = vld [vmem:[%s280 + $0x1a0] sm:$0xff]
        %v464 = vld [vmem:[%s280 + $0x1a8] sm:$0xff]
        %v465 = vld [vmem:[%s280 + $0x1b0] sm:$0xff]
        %v466 = vld [vmem:[%s280 + $0x1b8] sm:$0xff]
        %v467 = vld [vmem:[%s280 + $0x1c0] sm:$0xff]
        %v468 = vld [vmem:[%s280 + $0x1c8] sm:$0xff]
        %v469 = vld [vmem:[%s280 + $0x1d0] sm:$0xff]
        %v470 = vld [vmem:[%s280 + $0x1d8] sm:$0xff]
        %v471 = vld [vmem:[%s280 + $0x1e0] sm:$0xff]
        %v472 = vld [vmem:[%s280 + $0x1e8] sm:$0xff]
        %v473 = vld [vmem:[%s280 + $0x1f0] sm:$0xff]
        %v474 = vld [vmem:[%s280 + $0x1f8] sm:$0xff]
        %475 = vmatpush.msra.mxu0 %v471
        %476 = vmatpush.msra.mxu0 %v467
        %477 = vmatpush.msra.mxu0 %v463
        %478 = vmatpush.msra.mxu0 %v459
        %479 = vmatpush.msra.mxu0 %v455
        %480 = vmatpush.msra.mxu0 %v451
        %481 = vmatpush.msra.mxu0 %v447
        %482 = vmatpush.msra.mxu0 %v443
        %483 = vmatpush.msra.mxu0 %v439
        %484 = vmatpush.msra.mxu0 %v435
        %485 = vmatpush.msra.mxu0 %v431
        %486 = vmatpush.msra.mxu0 %v427
        %487 = vmatpush.msra.mxu0 %v423
        %488 = vmatpush.msra.mxu0 %v419
        %489 = vmatpush.msra.mxu0 %v415
        %490 = vmatpush.msra.mxu0 %v411
        %491 = vmatmul.f32.gmra.mxu0 %v407
        %v492 = vpop.f32.mrf.mxu0
        %v493 = vadd.f32 0.0, %v492
        %494 = vmatmul.f32.gmra.mxu0 %v408
        %v495 = vpop.f32.mrf.mxu0
        %v496 = vadd.f32 0.0, %v495
        %497 = vmatmul.f32.gmra.mxu0 %v409
        %v498 = vpop.f32.mrf.mxu0
        %v499 = vadd.f32 0.0, %v498
        %500 = vmatmul.f32.gmra.mxu0 %v410
        %v501 = vpop.f32.mrf.mxu0
        %v502 = vadd.f32 0.0, %v501
        %503 = vdwg.mxu0
        %504 = vmatpush.msra.mxu0 %v472
        %505 = vmatpush.msra.mxu0 %v468
        %506 = vmatpush.msra.mxu0 %v464
        %507 = vmatpush.msra.mxu0 %v460
        %508 = vmatpush.msra.mxu0 %v456
        %509 = vmatpush.msra.mxu0 %v452
        %510 = vmatpush.msra.mxu0 %v448
        %511 = vmatpush.msra.mxu0 %v444
        %512 = vmatpush.msra.mxu0 %v440
        %513 = vmatpush.msra.mxu0 %v436
        %514 = vmatpush.msra.mxu0 %v432
        %515 = vmatpush.msra.mxu0 %v428
        %516 = vmatpush.msra.mxu0 %v424
        %517 = vmatpush.msra.mxu0 %v420
        %518 = vmatpush.msra.mxu0 %v416
        %519 = vmatpush.msra.mxu0 %v412
        %520 = vmatmul.f32.gmra.mxu0 %v407
        %v521 = vpop.f32.mrf.mxu0
        %v522 = vadd.f32 0.0, %v521
        %523 = vmatmul.f32.gmra.mxu0 %v408
        %v524 = vpop.f32.mrf.mxu0
        %v525 = vadd.f32 0.0, %v524
        %526 = vmatmul.f32.gmra.mxu0 %v409
        %v527 = vpop.f32.mrf.mxu0
        %v528 = vadd.f32 0.0, %v527
        %529 = vmatmul.f32.gmra.mxu0 %v410
        %v530 = vpop.f32.mrf.mxu0
        %v531 = vadd.f32 0.0, %v530
        %532 = vdwg.mxu0
        %533 = vmatpush.msra.mxu0 %v473
        %534 = vmatpush.msra.mxu0 %v469
        %535 = vmatpush.msra.mxu0 %v465
        %536 = vmatpush.msra.mxu0 %v461
        %537 = vmatpush.msra.mxu0 %v457
        %538 = vmatpush.msra.mxu0 %v453
        %539 = vmatpush.msra.mxu0 %v449
        %540 = vmatpush.msra.mxu0 %v445
        %541 = vmatpush.msra.mxu0 %v441
        %542 = vmatpush.msra.mxu0 %v437
        %543 = vmatpush.msra.mxu0 %v433
        %544 = vmatpush.msra.mxu0 %v429
        %545 = vmatpush.msra.mxu0 %v425
        %546 = vmatpush.msra.mxu0 %v421
        %547 = vmatpush.msra.mxu0 %v417
        %548 = vmatpush.msra.mxu0 %v413
        %549 = vmatmul.f32.gmra.mxu0 %v407
        %v550 = vpop.f32.mrf.mxu0
        %v551 = vadd.f32 0.0, %v550
        %552 = vmatmul.f32.gmra.mxu0 %v408
        %v553 = vpop.f32.mrf.mxu0
        %v554 = vadd.f32 0.0, %v553
        %555 = vmatmul.f32.gmra.mxu0 %v409
        %v556 = vpop.f32.mrf.mxu0
        %v557 = vadd.f32 0.0, %v556
        %558 = vmatmul.f32.gmra.mxu0 %v410
        %v559 = vpop.f32.mrf.mxu0
        %v560 = vadd.f32 0.0, %v559
        %561 = vdwg.mxu0
        %562 = vmatpush.msra.mxu0 %v474
        %563 = vmatpush.msra.mxu0 %v470
        %564 = vmatpush.msra.mxu0 %v466
        %565 = vmatpush.msra.mxu0 %v462
        %566 = vmatpush.msra.mxu0 %v458
        %567 = vmatpush.msra.mxu0 %v454
        %568 = vmatpush.msra.mxu0 %v450
        %569 = vmatpush.msra.mxu0 %v446
        %570 = vmatpush.msra.mxu0 %v442
        %571 = vmatpush.msra.mxu0 %v438
        %572 = vmatpush.msra.mxu0 %v434
        %573 = vmatpush.msra.mxu0 %v430
        %574 = vmatpush.msra.mxu0 %v426
        %575 = vmatpush.msra.mxu0 %v422
        %576 = vmatpush.msra.mxu0 %v418
        %577 = vmatpush.msra.mxu0 %v414
        %578 = vmatmul.f32.gmra.mxu0 %v407
        %v579 = vpop.f32.mrf.mxu0
        %v580 = vadd.f32 0.0, %v579
        %581 = vmatmul.f32.gmra.mxu0 %v408
        %v582 = vpop.f32.mrf.mxu0
        %v583 = vadd.f32 0.0, %v582
        %584 = vmatmul.f32.gmra.mxu0 %v409
        %v585 = vpop.f32.mrf.mxu0
        %v586 = vadd.f32 0.0, %v585
        %587 = vmatmul.f32.gmra.mxu0 %v410
        %v588 = vpop.f32.mrf.mxu0
        %v589 = vadd.f32 0.0, %v588
        %590 = vdwg.mxu0
        %v591 = vadd.f32 %v391, %v493
        %v592 = vadd.f32 %v392, %v522
        %v593 = vadd.f32 %v393, %v551
        %v594 = vadd.f32 %v394, %v580
        %v595 = vadd.f32 %v395, %v496
        %v596 = vadd.f32 %v396, %v525
        %v597 = vadd.f32 %v397, %v554
        %v598 = vadd.f32 %v398, %v583
        %v599 = vadd.f32 %v399, %v499
        %v600 = vadd.f32 %v400, %v528
        %v601 = vadd.f32 %v401, %v557
        %v602 = vadd.f32 %v402, %v586
        %v603 = vadd.f32 %v403, %v502
        %v604 = vadd.f32 %v404, %v531
        %v605 = vadd.f32 %v405, %v560
        %v606 = vadd.f32 %v406, %v589
        %607 = vst [vmem:[#allocation2] sm:$0xff] %v591
        %608 = vst [vmem:[#allocation2 + $0x8] sm:$0xff] %v592
        %609 = vst [vmem:[#allocation2 + $0x10] sm:$0xff] %v593
        %610 = vst [vmem:[#allocation2 + $0x18] sm:$0xff] %v594
        %611 = vst [vmem:[#allocation2 + $0x20] sm:$0xff] %v595
        %612 = vst [vmem:[#allocation2 + $0x28] sm:$0xff] %v596
        %613 = vst [vmem:[#allocation2 + $0x30] sm:$0xff] %v597
        %614 = vst [vmem:[#allocation2 + $0x38] sm:$0xff] %v598
        %615 = vst [vmem:[#allocation2 + $0x40] sm:$0xff] %v599
        %616 = vst [vmem:[#allocation2 + $0x48] sm:$0xff] %v600
        %617 = vst [vmem:[#allocation2 + $0x50] sm:$0xff] %v601
        %618 = vst [vmem:[#allocation2 + $0x58] sm:$0xff] %v602
        %619 = vst [vmem:[#allocation2 + $0x60] sm:$0xff] %v603
        %620 = vst [vmem:[#allocation2 + $0x68] sm:$0xff] %v604
        %621 = vst [vmem:[#allocation2 + $0x70] sm:$0xff] %v605
        %622 = vst [vmem:[#allocation2 + $0x78] sm:$0xff] %v606
        %p623 = scmp.eq.s32.totalorder %s28, 3
        // Predicated region
        $region53: #{tpu_custom_call.1} parent=39 // pred_check
          %p624 = pneg %p623
        $region54: #{tpu_custom_call.1} parent=39 // pred_check_branch
          %626 = sbr.rel (%p624) target = $region56
        $region55: #{tpu_custom_call.1} parent=39 // pred_region
          %v627 = vld [vmem:[#allocation2] sm:$0xff]
          %v628 = vld [vmem:[#allocation2 + $0x8] sm:$0xff]
          %v629 = vld [vmem:[#allocation2 + $0x10] sm:$0xff]
          %v630 = vld [vmem:[#allocation2 + $0x18] sm:$0xff]
          %v631 = vld [vmem:[#allocation2 + $0x20] sm:$0xff]
          %v632 = vld [vmem:[#allocation2 + $0x28] sm:$0xff]
          %v633 = vld [vmem:[#allocation2 + $0x30] sm:$0xff]
          %v634 = vld [vmem:[#allocation2 + $0x38] sm:$0xff]
          %v635 = vld [vmem:[#allocation2 + $0x40] sm:$0xff]
          %v636 = vld [vmem:[#allocation2 + $0x48] sm:$0xff]
          %v637 = vld [vmem:[#allocation2 + $0x50] sm:$0xff]
          %v638 = vld [vmem:[#allocation2 + $0x58] sm:$0xff]
          %v639 = vld [vmem:[#allocation2 + $0x60] sm:$0xff]
          %v640 = vld [vmem:[#allocation2 + $0x68] sm:$0xff]
          %v641 = vld [vmem:[#allocation2 + $0x70] sm:$0xff]
          %v642 = vld [vmem:[#allocation2 + $0x78] sm:$0xff]
          %v659 = vrot.slane %v628, 4
          %v660 = vrot.slane %v630, 4
          %v661 = vrot.slane %v632, 4
          %v662 = vrot.slane %v634, 4
          %v663 = vrot.slane %v636, 4
          %v664 = vrot.slane %v638, 4
          %v665 = vrot.slane %v640, 4
          %v666 = vrot.slane %v642, 4
          %vm667 = vcmask 1043456
          %v668 = vsel %vm667, %v627, %v659
          %v669 = vsel %vm667, %v629, %v660
          %v670 = vsel %vm667, %v631, %v661
          %v671 = vsel %vm667, %v633, %v662
          %v672 = vsel %vm667, %v635, %v663
          %v673 = vsel %vm667, %v637, %v664
          %v674 = vsel %vm667, %v639, %v665
          %v675 = vsel %vm667, %v641, %v666
          %v676 = vrot.slane %v670, 7
          %vm677 = vcmask 1041409
          %v678 = vsel %vm677, %v676, %v668
          %vm679 = vcmask 1045509
          %v680 = vsel %vm679, %v676, %v678
          %v681 = vrot.slane %v672, 6
          %vm682 = vcmask 1042434
          %v683 = vsel %vm682, %v681, %v680
          %vm684 = vcmask 1046534
          %v685 = vsel %vm684, %v681, %v683
          %v686 = vrot.slane %v674, 5
          %vm687 = vcmask 1043459
          %v688 = vsel %vm687, %v686, %v685
          %vm689 = vcmask 1047559
          %v690 = vsel %vm689, %v686, %v688
          %v691 = vrot.slane %v671, 7
          %v692 = vsel %vm677, %v691, %v669
          %v693 = vsel %vm679, %v691, %v692
          %v694 = vrot.slane %v673, 6
          %v695 = vsel %vm682, %v694, %v693
          %v696 = vsel %vm684, %v694, %v695
          %v697 = vrot.slane %v675, 5
          %v698 = vsel %vm687, %v697, %v696
          %v699 = vsel %vm689, %v697, %v698
          %702 = vst [vmem:[#allocation8] sm:$0xff] %v690
          %703 = vst [vmem:[#allocation8 + $0x8] sm:$0xff] %v699
          %704 = vst.sshfl [vmem:[#allocation1] sm:$0xff pattern:$0x75316420] %v627
          %705 = vst.sshfl [vmem:[#allocation1 + $0x8] sm:$0xff pattern:$0x75316420] %v628
          %706 = vst.sshfl [vmem:[#allocation1 + $0x10] sm:$0xff pattern:$0x75316420] %v629
          %707 = vst.sshfl [vmem:[#allocation1 + $0x18] sm:$0xff pattern:$0x75316420] %v630
          %s708 = scalar_lea.vmem [#allocation1], 1
          %v709 = vld [vmem:[%s708] ss:$2 sm:$0xff]
          %s710 = scalar_lea.vmem [#allocation1], 17
          %v711 = vld [vmem:[%s710] ss:$2 sm:$0xff]
          %712 = vst.sshfl [vmem:[#allocation1 + $0x20] sm:$0xff pattern:$0x75316420] %v631
          %713 = vst.sshfl [vmem:[#allocation1 + $0x28] sm:$0xff pattern:$0x75316420] %v632
          %714 = vst.sshfl [vmem:[#allocation1 + $0x30] sm:$0xff pattern:$0x75316420] %v633
          %715 = vst.sshfl [vmem:[#allocation1 + $0x38] sm:$0xff pattern:$0x75316420] %v634
          %s716 = scalar_lea.vmem [#allocation1], 33
          %v717 = vld [vmem:[%s716] ss:$2 sm:$0xff]
          %s718 = scalar_lea.vmem [#allocation1], 49
          %v719 = vld [vmem:[%s718] ss:$2 sm:$0xff]
          %720 = vst.sshfl [vmem:[#allocation1] sm:$0xff pattern:$0x75316420] %v635
          %721 = vst.sshfl [vmem:[#allocation1 + $0x8] sm:$0xff pattern:$0x75316420] %v636
          %722 = vst.sshfl [vmem:[#allocation1 + $0x10] sm:$0xff pattern:$0x75316420] %v637
          %723 = vst.sshfl [vmem:[#allocation1 + $0x18] sm:$0xff pattern:$0x75316420] %v638
          %v724 = vld [vmem:[%s708] ss:$2 sm:$0xff]
          %v725 = vld [vmem:[%s710] ss:$2 sm:$0xff]
          %726 = vst.sshfl [vmem:[#allocation1 + $0x20] sm:$0xff pattern:$0x75316420] %v639
          %727 = vst.sshfl [vmem:[#allocation1 + $0x28] sm:$0xff pattern:$0x75316420] %v640
          %728 = vst.sshfl [vmem:[#allocation1 + $0x30] sm:$0xff pattern:$0x75316420] %v641
          %729 = vst.sshfl [vmem:[#allocation1 + $0x38] sm:$0xff pattern:$0x75316420] %v642
          %v730 = vld [vmem:[%s716] ss:$2 sm:$0xff]
          %v731 = vld [vmem:[%s718] ss:$2 sm:$0xff]
          %v732 = vrot.slane %v717, 7
          %v733 = vsel %vm677, %v732, %v709
          %v734 = vsel %vm679, %v732, %v733
          %v735 = vrot.slane %v724, 6
          %v736 = vsel %vm682, %v735, %v734
          %v737 = vsel %vm684, %v735, %v736
          %v738 = vrot.slane %v730, 5
          %v739 = vsel %vm687, %v738, %v737
          %v740 = vsel %vm689, %v738, %v739
          %v741 = vrot.slane %v719, 7
          %v742 = vsel %vm677, %v741, %v711
          %v743 = vsel %vm679, %v741, %v742
          %v744 = vrot.slane %v725, 6
          %v745 = vsel %vm682, %v744, %v743
          %v746 = vsel %vm684, %v744, %v745
          %v747 = vrot.slane %v731, 5
          %v748 = vsel %vm687, %v747, %v746
          %v749 = vsel %vm689, %v747, %v748
          %752 = vst [vmem:[#allocation8 + $0x10] sm:$0xff] %v740
          %753 = vst [vmem:[#allocation8 + $0x18] sm:$0xff] %v749
          %754 = vst [vmem:[#allocation8 + $0x20] sm:$0xff] 0.0
          %755 = vst [vmem:[#allocation8 + $0x28] sm:$0xf] 0.0
          %v756 = vld [vmem:[#allocation8 + $0x4] sm:$0xff]
          %v757 = vld [vmem:[#allocation8 + $0xc] sm:$0xff]
          %v758 = vrot.slane %v668, 1
          %v759 = vsel %vm677, %v670, %v758
          %v760 = vsel %vm679, %v670, %v759
          %v761 = vrot.slane %v672, 7
          %v762 = vsel %vm682, %v761, %v760
          %v763 = vsel %vm684, %v761, %v762
          %v764 = vrot.slane %v674, 6
          %v765 = vsel %vm687, %v764, %v763
          %v766 = vsel %vm689, %v764, %v765
          %v767 = vrot.slane %v669, 1
          %v768 = vsel %vm677, %v671, %v767
          %v769 = vsel %vm679, %v671, %v768
          %v770 = vrot.slane %v673, 7
          %v771 = vsel %vm682, %v770, %v769
          %v772 = vsel %vm684, %v770, %v771
          %v773 = vrot.slane %v675, 6
          %v774 = vsel %vm687, %v773, %v772
          %v775 = vsel %vm689, %v773, %v774
          %v778 = vadd.f32 %v756, %v766
          %v779 = vadd.f32 %v757, %v775
          %780 = vst [vmem:[#allocation8 + $0x4] sm:$0xff] %v778
          %781 = vst [vmem:[#allocation8 + $0xc] sm:$0xff] %v779
          %v782 = vld [vmem:[#allocation8 + $0x14] sm:$0xff]
          %v783 = vld [vmem:[#allocation8 + $0x1c] sm:$0xff]
          %784 = vst.sshfl [vmem:[#allocation1] sm:$0xff pattern:$0x75316420] %v627
          %785 = vst.sshfl [vmem:[#allocation1 + $0x8] sm:$0xff pattern:$0x75316420] %v628
          %786 = vst.sshfl [vmem:[#allocation1 + $0x10] sm:$0xff pattern:$0x75316420] %v629
          %787 = vst.sshfl [vmem:[#allocation1 + $0x18] sm:$0xff pattern:$0x75316420] %v630
          %s788 = scalar_lea.vmem [#allocation1], 1
          %v789 = vld [vmem:[%s788] ss:$2 sm:$0xff]
          %s790 = scalar_lea.vmem [#allocation1], 17
          %v791 = vld [vmem:[%s790] ss:$2 sm:$0xff]
          %792 = vst.sshfl [vmem:[#allocation1 + $0x20] sm:$0xff pattern:$0x75316420] %v631
          %793 = vst.sshfl [vmem:[#allocation1 + $0x28] sm:$0xff pattern:$0x75316420] %v632
          %794 = vst.sshfl [vmem:[#allocation1 + $0x30] sm:$0xff pattern:$0x75316420] %v633
          %795 = vst.sshfl [vmem:[#allocation1 + $0x38] sm:$0xff pattern:$0x75316420] %v634
          %s796 = scalar_lea.vmem [#allocation1], 33
          %v797 = vld [vmem:[%s796] ss:$2 sm:$0xff]
          %s798 = scalar_lea.vmem [#allocation1], 49
          %v799 = vld [vmem:[%s798] ss:$2 sm:$0xff]
          %800 = vst.sshfl [vmem:[#allocation1] sm:$0xff pattern:$0x75316420] %v635
          %801 = vst.sshfl [vmem:[#allocation1 + $0x8] sm:$0xff pattern:$0x75316420] %v636
          %802 = vst.sshfl [vmem:[#allocation1 + $0x10] sm:$0xff pattern:$0x75316420] %v637
          %803 = vst.sshfl [vmem:[#allocation1 + $0x18] sm:$0xff pattern:$0x75316420] %v638
          %v804 = vld [vmem:[%s788] ss:$2 sm:$0xff]
          %v805 = vld [vmem:[%s790] ss:$2 sm:$0xff]
          %806 = vst.sshfl [vmem:[#allocation1 + $0x20] sm:$0xff pattern:$0x75316420] %v639
          %807 = vst.sshfl [vmem:[#allocation1 + $0x28] sm:$0xff pattern:$0x75316420] %v640
          %808 = vst.sshfl [vmem:[#allocation1 + $0x30] sm:$0xff pattern:$0x75316420] %v641
          %809 = vst.sshfl [vmem:[#allocation1 + $0x38] sm:$0xff pattern:$0x75316420] %v642
          %v810 = vld [vmem:[%s796] ss:$2 sm:$0xff]
          %v811 = vld [vmem:[%s798] ss:$2 sm:$0xff]
          %v812 = vrot.slane %v789, 1
          %v813 = vsel %vm677, %v797, %v812
          %v814 = vsel %vm679, %v797, %v813
          %v815 = vrot.slane %v804, 7
          %v816 = vsel %vm682, %v815, %v814
          %v817 = vsel %vm684, %v815, %v816
          %v818 = vrot.slane %v810, 6
          %v819 = vsel %vm687, %v818, %v817
          %v820 = vsel %vm689, %v818, %v819
          %v821 = vrot.slane %v791, 1
          %v822 = vsel %vm677, %v799, %v821
          %v823 = vsel %vm679, %v799, %v822
          %v824 = vrot.slane %v805, 7
          %v825 = vsel %vm682, %v824, %v823
          %v826 = vsel %vm684, %v824, %v825
          %v827 = vrot.slane %v811, 6
          %v828 = vsel %vm687, %v827, %v826
          %v829 = vsel %vm689, %v827, %v828
          %v832 = vadd.f32 %v782, %v820
          %v833 = vadd.f32 %v783, %v829
          %834 = vst [vmem:[#allocation8 + $0x14] sm:$0xff] %v832
          %835 = vst [vmem:[#allocation8 + $0x1c] sm:$0xff] %v833
          %v836 = vld [vmem:[#allocation8 + $0x8] sm:$0xff]
          %v837 = vld [vmem:[#allocation8 + $0x10] sm:$0xff]
          %v838 = vrot.slane %v668, 2
          %v839 = vrot.slane %v670, 1
          %v840 = vsel %vm677, %v839, %v838
          %v841 = vsel %vm679, %v839, %v840
          %v842 = vsel %vm682, %v672, %v841
          %v843 = vsel %vm684, %v672, %v842
          %v844 = vrot.slane %v674, 7
          %v845 = vsel %vm687, %v844, %v843
          %v846 = vsel %vm689, %v844, %v845
          %v847 = vrot.slane %v669, 2
          %v848 = vrot.slane %v671, 1
          %v849 = vsel %vm677, %v848, %v847
          %v850 = vsel %vm679, %v848, %v849
          %v851 = vsel %vm682, %v673, %v850
          %v852 = vsel %vm684, %v673, %v851
          %v853 = vrot.slane %v675, 7
          %v854 = vsel %vm687, %v853, %v852
          %v855 = vsel %vm689, %v853, %v854
          %v858 = vadd.f32 %v836, %v846
          %v859 = vadd.f32 %v837, %v855
          %860 = vst [vmem:[#allocation8 + $0x8] sm:$0xff] %v858
          %861 = vst [vmem:[#allocation8 + $0x10] sm:$0xff] %v859
          %v862 = vld [vmem:[#allocation8 + $0x18] sm:$0xff]
          %v863 = vld [vmem:[#allocation8 + $0x20] sm:$0xff]
          %864 = vst.sshfl [vmem:[#allocation1] sm:$0xff pattern:$0x75316420] %v627
          %865 = vst.sshfl [vmem:[#allocation1 + $0x8] sm:$0xff pattern:$0x75316420] %v628
          %866 = vst.sshfl [vmem:[#allocation1 + $0x10] sm:$0xff pattern:$0x75316420] %v629
          %867 = vst.sshfl [vmem:[#allocation1 + $0x18] sm:$0xff pattern:$0x75316420] %v630
          %s868 = scalar_lea.vmem [#allocation1], 1
          %v869 = vld [vmem:[%s868] ss:$2 sm:$0xff]
          %s870 = scalar_lea.vmem [#allocation1], 17
          %v871 = vld [vmem:[%s870] ss:$2 sm:$0xff]
          %872 = vst.sshfl [vmem:[#allocation1 + $0x20] sm:$0xff pattern:$0x75316420] %v631
          %873 = vst.sshfl [vmem:[#allocation1 + $0x28] sm:$0xff pattern:$0x75316420] %v632
          %874 = vst.sshfl [vmem:[#allocation1 + $0x30] sm:$0xff pattern:$0x75316420] %v633
          %875 = vst.sshfl [vmem:[#allocation1 + $0x38] sm:$0xff pattern:$0x75316420] %v634
          %s876 = scalar_lea.vmem [#allocation1], 33
          %v877 = vld [vmem:[%s876] ss:$2 sm:$0xff]
          %s878 = scalar_lea.vmem [#allocation1], 49
          %v879 = vld [vmem:[%s878] ss:$2 sm:$0xff]
          %880 = vst.sshfl [vmem:[#allocation1] sm:$0xff pattern:$0x75316420] %v635
          %881 = vst.sshfl [vmem:[#allocation1 + $0x8] sm:$0xff pattern:$0x75316420] %v636
          %882 = vst.sshfl [vmem:[#allocation1 + $0x10] sm:$0xff pattern:$0x75316420] %v637
          %883 = vst.sshfl [vmem:[#allocation1 + $0x18] sm:$0xff pattern:$0x75316420] %v638
          %v884 = vld [vmem:[%s868] ss:$2 sm:$0xff]
          %v885 = vld [vmem:[%s870] ss:$2 sm:$0xff]
          %886 = vst.sshfl [vmem:[#allocation1 + $0x20] sm:$0xff pattern:$0x75316420] %v639
          %887 = vst.sshfl [vmem:[#allocation1 + $0x28] sm:$0xff pattern:$0x75316420] %v640
          %888 = vst.sshfl [vmem:[#allocation1 + $0x30] sm:$0xff pattern:$0x75316420] %v641
          %889 = vst.sshfl [vmem:[#allocation1 + $0x38] sm:$0xff pattern:$0x75316420] %v642
          %v890 = vld [vmem:[%s876] ss:$2 sm:$0xff]
          %v891 = vld [vmem:[%s878] ss:$2 sm:$0xff]
          %v892 = vrot.slane %v869, 2
          %v893 = vrot.slane %v877, 1
          %v894 = vsel %vm677, %v893, %v892
          %v895 = vsel %vm679, %v893, %v894
          %v896 = vsel %vm682, %v884, %v895
          %v897 = vsel %vm684, %v884, %v896
          %v898 = vrot.slane %v890, 7
          %v899 = vsel %vm687, %v898, %v897
          %v900 = vsel %vm689, %v898, %v899
          %v901 = vrot.slane %v871, 2
          %v902 = vrot.slane %v879, 1
          %v903 = vsel %vm677, %v902, %v901
          %v904 = vsel %vm679, %v902, %v903
          %v905 = vsel %vm682, %v885, %v904
          %v906 = vsel %vm684, %v885, %v905
          %v907 = vrot.slane %v891, 7
          %v908 = vsel %vm687, %v907, %v906
          %v909 = vsel %vm689, %v907, %v908
          %v912 = vadd.f32 %v862, %v900
          %v913 = vadd.f32 %v863, %v909
          %914 = vst [vmem:[#allocation8 + $0x18] sm:$0xff] %v912
          %915 = vst [vmem:[#allocation8 + $0x20] sm:$0xff] %v913
          %v916 = vld [vmem:[#allocation8 + $0xc] sm:$0xff]
          %v917 = vld [vmem:[#allocation8 + $0x14] sm:$0xff]
          %v918 = vrot.slane %v668, 3
          %v919 = vrot.slane %v670, 2
          %v920 = vsel %vm677, %v919, %v918
          %v921 = vsel %vm679, %v919, %v920
          %v922 = vrot.slane %v672, 1
          %v923 = vsel %vm682, %v922, %v921
          %v924 = vsel %vm684, %v922, %v923
          %v925 = vsel %vm687, %v674, %v924
          %v926 = vsel %vm689, %v674, %v925
          %v927 = vrot.slane %v669, 3
          %v928 = vrot.slane %v671, 2
          %v929 = vsel %vm677, %v928, %v927
          %v930 = vsel %vm679, %v928, %v929
          %v931 = vrot.slane %v673, 1
          %v932 = vsel %vm682, %v931, %v930
          %v933 = vsel %vm684, %v931, %v932
          %v934 = vsel %vm687, %v675, %v933
          %v935 = vsel %vm689, %v675, %v934
          %v938 = vadd.f32 %v916, %v926
          %v939 = vadd.f32 %v917, %v935
          %940 = vst [vmem:[#allocation8 + $0xc] sm:$0xff] %v938
          %941 = vst [vmem:[#allocation8 + $0x14] sm:$0xff] %v939
          %v942 = vld [vmem:[#allocation8 + $0x1c] sm:$0xff]
          %v943 = vld [vmem:[#allocation8 + $0x24] sm:$0xff]
          %944 = vst.sshfl [vmem:[#allocation1] sm:$0xff pattern:$0x75316420] %v627
          %945 = vst.sshfl [vmem:[#allocation1 + $0x8] sm:$0xff pattern:$0x75316420] %v628
          %946 = vst.sshfl [vmem:[#allocation1 + $0x10] sm:$0xff pattern:$0x75316420] %v629
          %947 = vst.sshfl [vmem:[#allocation1 + $0x18] sm:$0xff pattern:$0x75316420] %v630
          %s948 = scalar_lea.vmem [#allocation1], 1
          %v949 = vld [vmem:[%s948] ss:$2 sm:$0xff]
          %s950 = scalar_lea.vmem [#allocation1], 17
          %v951 = vld [vmem:[%s950] ss:$2 sm:$0xff]
          %952 = vst.sshfl [vmem:[#allocation1 + $0x20] sm:$0xff pattern:$0x75316420] %v631
          %953 = vst.sshfl [vmem:[#allocation1 + $0x28] sm:$0xff pattern:$0x75316420] %v632
          %954 = vst.sshfl [vmem:[#allocation1 + $0x30] sm:$0xff pattern:$0x75316420] %v633
          %955 = vst.sshfl [vmem:[#allocation1 + $0x38] sm:$0xff pattern:$0x75316420] %v634
          %s956 = scalar_lea.vmem [#allocation1], 33
          %v957 = vld [vmem:[%s956] ss:$2 sm:$0xff]
          %s958 = scalar_lea.vmem [#allocation1], 49
          %v959 = vld [vmem:[%s958] ss:$2 sm:$0xff]
          %960 = vst.sshfl [vmem:[#allocation1] sm:$0xff pattern:$0x75316420] %v635
          %961 = vst.sshfl [vmem:[#allocation1 + $0x8] sm:$0xff pattern:$0x75316420] %v636
          %962 = vst.sshfl [vmem:[#allocation1 + $0x10] sm:$0xff pattern:$0x75316420] %v637
          %963 = vst.sshfl [vmem:[#allocation1 + $0x18] sm:$0xff pattern:$0x75316420] %v638
          %v964 = vld [vmem:[%s948] ss:$2 sm:$0xff]
          %v965 = vld [vmem:[%s950] ss:$2 sm:$0xff]
          %966 = vst.sshfl [vmem:[#allocation1 + $0x20] sm:$0xff pattern:$0x75316420] %v639
          %967 = vst.sshfl [vmem:[#allocation1 + $0x28] sm:$0xff pattern:$0x75316420] %v640
          %968 = vst.sshfl [vmem:[#allocation1 + $0x30] sm:$0xff pattern:$0x75316420] %v641
          %969 = vst.sshfl [vmem:[#allocation1 + $0x38] sm:$0xff pattern:$0x75316420] %v642
          %v970 = vld [vmem:[%s956] ss:$2 sm:$0xff]
          %v971 = vld [vmem:[%s958] ss:$2 sm:$0xff]
          %v972 = vrot.slane %v949, 3
          %v973 = vrot.slane %v957, 2
          %v974 = vsel %vm677, %v973, %v972
          %v975 = vsel %vm679, %v973, %v974
          %v976 = vrot.slane %v964, 1
          %v977 = vsel %vm682, %v976, %v975
          %v978 = vsel %vm684, %v976, %v977
          %v979 = vsel %vm687, %v970, %v978
          %v980 = vsel %vm689, %v970, %v979
          %v981 = vrot.slane %v951, 3
          %v982 = vrot.slane %v959, 2
          %v983 = vsel %vm677, %v982, %v981
          %v984 = vsel %vm679, %v982, %v983
          %v985 = vrot.slane %v965, 1
          %v986 = vsel %vm682, %v985, %v984
          %v987 = vsel %vm684, %v985, %v986
          %v988 = vsel %vm687, %v971, %v987
          %v989 = vsel %vm689, %v971, %v988
          %v992 = vadd.f32 %v942, %v980
          %v993 = vadd.f32 %v943, %v989
          %994 = vst [vmem:[#allocation8 + $0x1c] sm:$0xff] %v992
          %995 = vst [vmem:[#allocation8 + $0x24] sm:$0xff] %v993
          %v996 = vld [vmem:[#allocation8] sm:$0xff]
          %v997 = vld [vmem:[#allocation8 + $0x8] sm:$0xff]
          %v998 = vld [vmem:[#allocation8 + $0x10] sm:$0xff]
          %v999 = vld [vmem:[#allocation8 + $0x18] sm:$0xff]
          %v1000 = vld [vmem:[#allocation8 + $0x20] sm:$0xff]
          %v1001 = vld [vmem:[#allocation8 + $0x28] sm:$0xf]
          %v1002 = vld [vmem:[%s4] sm:$0xff]
          %v1003 = vld [vmem:[%s4 + $0x8] sm:$0x7]
          %v1006 = vperm.slane %v1002, 0
          %v1007 = vperm.slane %v1002, 1
          %v1008 = vperm.slane %v1002, 2
          %v1009 = vperm.slane %v1002, 3
          %v1010 = vperm.slane %v1002, 4
          %v1011 = vperm.slane %v1002, 5
          %v1012 = vperm.slane %v1002, 6
          %v1013 = vperm.slane %v1002, 7
          %v1014 = vperm.slane %v1003, 0
          %v1015 = vperm.slane %v1003, 1
          %v1016 = vperm.slane %v1003, 2
          %v1018 = vrot.slane %v1007, 4
          %v1019 = vrot.slane %v1009, 4
          %v1020 = vrot.slane %v1011, 4
          %v1021 = vrot.slane %v1013, 4
          %v1022 = vrot.slane %v1015, 4
          %v1023 = vsel %vm667, %v1006, %v1018
          %v1024 = vsel %vm667, %v1008, %v1019
          %v1025 = vsel %vm667, %v1010, %v1020
          %v1026 = vsel %vm667, %v1012, %v1021
          %v1027 = vsel %vm667, %v1014, %v1022
          %v1033 = vmul.f32 %v996, %v1023
          %v1034 = vmul.f32 %v997, %v1024
          %v1035 = vmul.f32 %v998, %v1025
          %v1036 = vmul.f32 %v999, %v1026
          %v1037 = vmul.f32 %v1000, %v1027
          %v1038 = vmul.f32 %v1001, %v1016
          %1039 = vst [vmem:[#allocation8] sm:$0xff] %v1033
          %1040 = vst [vmem:[#allocation8 + $0x8] sm:$0xff] %v1034
          %1041 = vst [vmem:[#allocation8 + $0x10] sm:$0xff] %v1035
          %1042 = vst [vmem:[#allocation8 + $0x18] sm:$0xff] %v1036
          %1043 = vst [vmem:[#allocation8 + $0x20] sm:$0xff] %v1037
          %1044 = vst [vmem:[#allocation8 + $0x28] sm:$0xf] %v1038
        $region56: #{tpu_custom_call.1} parent=39 // pred_fallthru
          _
        // Predicated region
        $region57: #{tpu_custom_call.1} parent=39 // pred_check
          %p1045 = pneg %p175
        $region58: #{tpu_custom_call.1} parent=39 // pred_check_branch
          %1047 = sbr.rel (%p1045) target = $region60
        $region59: #{tpu_custom_call.1} parent=39 // pred_region
          %1049 = vsyncadd [#allocation5], 0
          %s1050 = smul.addr %s27, 11
          %s1051 = smul.addr %s1050, 4
          %s1052 = scalar_lea.hbm %s5, %s1051
          %s1054 = sshll.u32 [#allocation8], 4
          %s1055 = int_to_ptr.vmem [resolvable:$true] %s1054
          %s1056 = sshll.u32 %s1052, 4
          %s1057 = int_to_ptr.hbm [resolvable:$true] %s1056
          %1059 = dma.vmem_to_hbm [thread:$0]  %s1055, 704, %s1057, [#allocation5]
        $region60: #{tpu_custom_call.1} parent=39 // pred_fallthru
          _
        // Predicated region
        $region61: #{tpu_custom_call.1} parent=39 // pred_check
          %p1060 = pneg %p175
        $region62: #{tpu_custom_call.1} parent=39 // pred_check_branch
          %1062 = sbr.rel (%p1060) target = $region64
        $region63: #{tpu_custom_call.1} parent=39 // pred_region
          %1064 = dma.done [#allocation5], 704
        $region64: #{tpu_custom_call.1} parent=39 // pred_fallthru
          _
      $region40: #{tpu_custom_call.1} parent=5 // pred_fallthru
        _
      %p1065 = scmp.le.s32.totalorder 2, %s18
      // Predicated region
      $region65: #{tpu_custom_call.1} parent=5 // pred_check
        %p1066 = pneg %p1065
      $region66: #{tpu_custom_call.1} parent=5 // pred_check_branch
        %1068 = sbr.rel (%p1066) target = $region68
      $region67: #{tpu_custom_call.1} parent=5 // pred_region
        %s1069 = ssub.s32 %s18, 2
      $region68: #{tpu_custom_call.1} parent=5 // pred_fallthru
        _
    $region6: #{tpu_custom_call.1} parent=1 // loop_footer
      %s22 = sadd.s32 1, %s18
    $region7: #{tpu_custom_call.1} parent=1 // loop_footer_branch
      %17 = sbr.rel target = $region3
    $region8: #{tpu_custom_call.1} parent=1 // loop_exit
      _
    %1070 = vsyncpa [#allocation4], 1
    %s1071 = scalar_lea.sflag [#allocation4], 1
    %1072 = vsyncpa %s1071, 1
    %1073 = vsyncpa [#allocation7], 1
    %s1074 = scalar_lea.sflag [#allocation7], 1
    %1075 = vsyncpa %s1074, 1
    %1076 = vsyncpa [#allocation5], 1
    %s1077 = scalar_lea.sflag [#allocation5], 1
    %1078 = vsyncpa %s1077, 1

</llo_original>
